<compile_context>
chip_gen: v7x
topology: tpu7x:2x2x1
jax: 0.10.0
libtpu: 0.0.40
codegen_flags: <defaults>
</compile_context>

<pallas_src>
import functools

import jax
import jax.numpy as jnp
from jax.experimental import pallas as pl
from jax.experimental.pallas import tpu as pltpu


def mha_kernel(q_ref, k_ref, v_ref, wq_ref, wk_ref, wv_ref, wfc3_ref,
               gamma_ref, beta_ref, out_ref, attn_ref, kh_ref, vh_ref, *,
               n_head, d_k, d_v, compute_dtype):
    """One (batch, q-tile) grid step.

    q_ref            : (1, block_q, d_model) f32 tile
    k_ref / v_ref    : (1, len_k, d_model)   compute-dtype tiles (full keys/values)
    wq/wk/wv_ref     : 2-D projection weights (compute dtype; wq pre-scaled)
    wfc3_ref         : (n_head, d_v, d_model) output-projection weight
    gamma/beta       : (1, d_model) LayerNorm affine params (f32)
    out_ref          : (1, block_q, d_model)
    attn_ref         : (1, n_head, block_q, len_k)
    kh_ref / vh_ref  : persistent VMEM scratch, head-major projected K/V
    """
    cd = compute_dtype
    lk = k_ref.shape[1]

    # ---- K/V projection + head-major relayout ONCE per batch (qi == 0) ----
    @pl.when(pl.program_id(1) == 0)
    def _():
        k = k_ref[0]                                    # (lk, d_model), compute dtype
        v = v_ref[0]
        K = jnp.dot(k, wk_ref[...], preferred_element_type=jnp.float32)  # (lk, H*d_k)
        V = jnp.dot(v, wv_ref[...], preferred_element_type=jnp.float32)  # (lk, H*d_v)
        kh_ref[...] = K.reshape(lk, n_head, d_k).transpose(1, 0, 2).astype(cd)
        vh_ref[...] = V.reshape(lk, n_head, d_v).transpose(1, 0, 2).astype(cd)

    q = q_ref[0]                                        # (bq, d_model) f32
    bq = q.shape[0]

    # residual is the *pre*-layernorm q (torch: residual = squeeze(q, 1) before LN)
    residual = q

    # ---- LayerNorm(d_model), eps = 1e-6  (f32 VPU/EUP math) ----
    mean = jnp.mean(q, axis=-1, keepdims=True)
    var = jnp.mean((q - mean) ** 2, axis=-1, keepdims=True)
    qn = (q - mean) * jax.lax.rsqrt(var + 1e-6)
    qn = qn * gamma_ref[...] + beta_ref[...]            # broadcast (1, d_model)

    # ---- Q projection (wq already folded with 1/sqrt(d_k)) ----
    Q = jnp.dot(qn.astype(cd), wq_ref[...],
                preferred_element_type=jnp.float32)     # (bq, H*d_k)
    Qh = Q.reshape(bq, n_head, d_k).transpose(1, 0, 2)  # (H, bq, d_k) f32

    # ---- scores: one batched MXU contraction against cached Kh ----
    s = jnp.einsum('hqd,hkd->hqk', Qh.astype(cd), kh_ref[...],
                   preferred_element_type=jnp.float32)  # (H, bq, lk)

    # ---- softmax (f32), EUP approx reciprocal instead of VPU divide ----
    s = s - jnp.max(s, axis=-1, keepdims=True)
    e = jnp.exp(s)
    p = e * pl.reciprocal(jnp.sum(e, axis=-1, keepdims=True), approx=True)
    attn_ref[0] = p.astype(attn_ref.dtype)
    # TODO(synk): attention dropout (eval mode => identity)

    # ---- PV: batched contraction against cached Vh ----
    o = jnp.einsum('hqk,hkd->hqd', p.astype(cd), vh_ref[...],
                   preferred_element_type=jnp.float32)  # (H, bq, d_v)

    # ---- output projection without the reverse head-major transpose ----
    y_h = jnp.einsum('hqd,hdm->hqm', o.astype(cd), wfc3_ref[...],
                     preferred_element_type=jnp.float32)  # (H, bq, d_model)
    y = jnp.sum(y_h, axis=0)                              # (bq, d_model) f32
    # TODO(synk): output dropout (eval mode => identity)
    out_ref[0] = (y + residual).astype(out_ref.dtype)


def _estimate_vmem_bytes(block_q, len_k, d_model, n_head, d_k, d_v,
                         attn_bytes, kv_bytes, cd_bytes):
    """Rough per-step VMEM footprint (double-buffered I/O + live intermediates)."""
    hdk, hdv = n_head * d_k, n_head * d_v
    est = 0
    est += 2 * block_q * d_model * 4                          # q tile (x2 buf, f32)
    est += 2 * block_q * d_model * 4                          # out tile (x2 buf, f32)
    est += 2 * 2 * len_k * d_model * kv_bytes                 # k, v tiles (x2 buf)
    est += 2 * (2 * d_model * hdk + d_model * hdv + hdv * d_model) * cd_bytes  # weights
    est += 2 * n_head * block_q * len_k * attn_bytes          # attn out tile (x2 buf)
    est += n_head * len_k * (d_k + d_v) * cd_bytes            # Kh/Vh scratch
    est += 3 * n_head * block_q * len_k * 4                   # s / e / p (f32)
    est += n_head * block_q * len_k * cd_bytes                # p cast to compute dtype
    est += (2 * block_q * hdk + 2 * n_head * block_q * d_v
            + n_head * block_q * d_model + 2 * block_q * d_model) * 4  # misc f32
    return est


def _pick_block_q(len_q, len_k, d_model, n_head, d_k, d_v,
                  attn_bytes, kv_bytes, cd_bytes, vmem_budget):
    """Largest q-tile that divides len_q AND fits the VMEM budget."""
    if len_q <= 8:
        return len_q
    best = None
    for cand in (512, 256, 128, 64, 32, 16, 8):
        if cand > len_q or len_q % cand != 0:
            continue
        best = cand
        if _estimate_vmem_bytes(cand, len_k, d_model, n_head, d_k, d_v,
                                attn_bytes, kv_bytes, cd_bytes) <= vmem_budget:
            return cand
    # TODO(synk): remainder/ragged q tiling for awkward (prime-ish) len_q.
    return best if best is not None else len_q


def _default_vmem_limit_bytes():
    cap = None
    try:
        cap = pltpu.get_tpu_info().vmem_capacity_bytes
    except Exception:
        cap = None
    if not cap:
        cap = 64 * 1024 * 1024          # conservative (v7x physical VMEM)
    return min(int(cap * 0.85), 100 * 1024 * 1024)


def multi_head_attention(q, k, v, params, *, n_head, d_k, d_v,
                         compute_dtype=jnp.bfloat16,
                         attn_dtype=jnp.bfloat16,
                         block_q=None,
                         vmem_limit_bytes=None):
    """Pallas wrapper. q/k/v: (sz_b, len, d_model) float32."""
    sz_b, len_q, d_model = q.shape
    len_k = k.shape[1]
    cd = compute_dtype

    wq, wk, wv, wfc, gamma, beta = params
    # Fold 1/sqrt(d_k) into the Q projection weight; store weights in compute dtype
    # (halves weight HBM->VMEM DMA for bf16).
    wq = (wq / (d_k ** 0.5)).astype(cd)
    wk = wk.astype(cd)
    wv = wv.astype(cd)
    wfc3 = wfc.reshape(n_head, d_v, d_model).astype(cd)     # (H, d_v, d_model)

    # k/v feed straight into compute-dtype matmuls: cast once in the wrapper.
    k = k.astype(cd)
    v = v.astype(cd)

    if vmem_limit_bytes is None:
        vmem_limit_bytes = _default_vmem_limit_bytes()

    attn_bytes = jnp.dtype(attn_dtype).itemsize
    cd_bytes = jnp.dtype(cd).itemsize

    if block_q is None:
        block_q = _pick_block_q(len_q, len_k, d_model, n_head, d_k, d_v,
                                attn_bytes, cd_bytes, cd_bytes,
                                int(vmem_limit_bytes * 0.9))
    assert len_q % block_q == 0, "block_q must divide len_q"
    n_q_blocks = len_q // block_q

    kernel = functools.partial(mha_kernel, n_head=n_head, d_k=d_k, d_v=d_v,
                               compute_dtype=cd)

    # Advisory cost estimate (projections counted once per batch — they are hoisted).
    flops = (2 * sz_b * len_q * d_model * n_head * d_k
             + 2 * sz_b * len_k * d_model * n_head * (d_k + d_v)
             + 2 * sz_b * n_head * len_q * len_k * (d_k + d_v)
             + 2 * sz_b * len_q * n_head * d_v * d_model)
    transcendentals = sz_b * n_head * len_q * len_k
    bytes_accessed = (q.size * 4 + (k.size + v.size) * cd_bytes
                      + (wq.size + wk.size + wv.size + wfc3.size) * cd_bytes
                      + (gamma.size + beta.size) * 4
                      + sz_b * len_q * d_model * 4
                      + sz_b * n_head * len_q * len_k * attn_bytes)

    out, attn = pl.pallas_call(
        kernel,
        out_shape=(
            jax.ShapeDtypeStruct((sz_b, len_q, d_model), q.dtype),
            jax.ShapeDtypeStruct((sz_b, n_head, len_q, len_k), attn_dtype),
        ),
        grid=(sz_b, n_q_blocks),
        in_specs=[
            pl.BlockSpec((1, block_q, d_model), lambda b, qi: (b, qi, 0)),
            pl.BlockSpec((1, len_k, d_model), lambda b, qi: (b, 0, 0)),
            pl.BlockSpec((1, len_k, d_model), lambda b, qi: (b, 0, 0)),
            pl.BlockSpec(wq.shape, lambda b, qi: (0, 0)),
            pl.BlockSpec(wk.shape, lambda b, qi: (0, 0)),
            pl.BlockSpec(wv.shape, lambda b, qi: (0, 0)),
            pl.BlockSpec(wfc3.shape, lambda b, qi: (0, 0, 0)),
            pl.BlockSpec(gamma.shape, lambda b, qi: (0, 0)),
            pl.BlockSpec(beta.shape, lambda b, qi: (0, 0)),
        ],
        out_specs=(
            pl.BlockSpec((1, block_q, d_model), lambda b, qi: (b, qi, 0)),
            pl.BlockSpec((1, n_head, block_q, len_k), lambda b, qi: (b, 0, qi, 0)),
        ),
        scratch_shapes=[
            pltpu.VMEM((n_head, len_k, d_k), cd),   # Kh, persists across q-tiles
            pltpu.VMEM((n_head, len_k, d_v), cd),   # Vh
        ],
        compiler_params=pltpu.CompilerParams(
            # qi must be sequential ("arbitrary"): Kh/Vh scratch computed at qi==0
            # is reused by all later q-tiles of the same batch.
            dimension_semantics=("parallel", "arbitrary"),
            vmem_limit_bytes=int(vmem_limit_bytes),
        ),
        cost_estimate=pl.CostEstimate(
            flops=int(flops),
            transcendentals=int(transcendentals),
            bytes_accessed=int(bytes_accessed),
        ),
    )(q, k, v, wq, wk, wv, wfc3, gamma, beta)

    # torch: if len_q == 1 the output is squeezed to (sz_b, d_model)
    if len_q == 1:
        out = out.reshape(sz_b, d_model)
    return out, attn


def reference(q, k, v, params, *, n_head, d_k, d_v):
    """Pure-JAX f32 reference mirroring the PyTorch forward (eval mode)."""
    wq, wk, wv, wfc, gamma, beta = params
    sz_b, len_q, d_model = q.shape
    len_k = k.shape[1]

    residual = jnp.squeeze(q, 1) if len_q == 1 else q
    mean = jnp.mean(q, axis=-1, keepdims=True)
    var = jnp.mean((q - mean) ** 2, axis=-1, keepdims=True)
    qn = (q - mean) / jnp.sqrt(var + 1e-6) * gamma[0] + beta[0]

    Q = (qn @ wq).reshape(sz_b, len_q, n_head, d_k).transpose(0, 2, 1, 3)
    K = (k @ wk).reshape(sz_b, len_k, n_head, d_k).transpose(0, 2, 1, 3)
    V = (v @ wv).reshape(sz_b, len_k, n_head, d_v).transpose(0, 2, 1, 3)

    s = jnp.einsum("bhqd,bhkd->bhqk", Q / (d_k ** 0.5), K)
    attn = jax.nn.softmax(s, axis=-1)
    o = jnp.einsum("bhqk,bhkd->bhqd", attn, V).transpose(0, 2, 1, 3)
    o = o.reshape(sz_b, -1) if len_q == 1 else o.reshape(sz_b, len_q, -1)
    out = o @ wfc + residual
    return out, attn


if __name__ == "__main__":
    # Small, module-consistent shapes.
    sz_b, seq, d_model = 2, 8, 32
    n_head, d_k, d_v = 4, 8, 8

    key = jax.random.PRNGKey(0)
    kq, kk, kv, k1, k2, k3, k4 = jax.random.split(key, 7)

    q = jax.random.normal(kq, (sz_b, seq, d_model), dtype=jnp.float32)
    k = jax.random.normal(kk, (sz_b, seq, d_model), dtype=jnp.float32)
    v = jax.random.normal(kv, (sz_b, seq, d_model), dtype=jnp.float32)

    # Deterministic synthetic parameters (Linear weights stored (in, out); no biases).
    wq = jax.random.normal(k1, (d_model, n_head * d_k), dtype=jnp.float32) * 0.1
    wk = jax.random.normal(k2, (d_model, n_head * d_k), dtype=jnp.float32) * 0.1
    wv = jax.random.normal(k3, (d_model, n_head * d_v), dtype=jnp.float32) * 0.1
    wfc = jax.random.normal(k4, (n_head * d_v, d_model), dtype=jnp.float32) * 0.1
    gamma = jnp.ones((1, d_model), dtype=jnp.float32)
    beta = jnp.zeros((1, d_model), dtype=jnp.float32)
    params = (wq, wk, wv, wfc, gamma, beta)

    out_r, attn_r = reference(q, k, v, params, n_head=n_head, d_k=d_k, d_v=d_v)

    # f32-compute path: tight-ish check (only deltas are op ordering + approx recip).
    out32, attn32 = multi_head_attention(q, k, v, params, n_head=n_head, d_k=d_k,
                                         d_v=d_v, compute_dtype=jnp.float32,
                                         attn_dtype=jnp.float32)
    out32 = jax.block_until_ready(out32)
    attn32 = jax.block_until_ready(attn32)
    assert jnp.allclose(out32, out_r, atol=2e-2, rtol=2e-2)
    assert jnp.allclose(attn32, attn_r, atol=2e-2, rtol=2e-2)

    # Default perf path: bf16 matmul operands + bf16 attn output, f32 accumulation.
    out, attn = multi_head_attention(q, k, v, params, n_head=n_head, d_k=d_k, d_v=d_v)
    out = jax.block_until_ready(out)
    attn = jax.block_until_ready(attn)

    assert out.shape == (sz_b, seq, d_model)
    assert attn.shape == (sz_b, n_head, seq, seq)
    assert jnp.allclose(out, out_r, atol=5e-2, rtol=5e-2)
    assert jnp.allclose(attn.astype(jnp.float32), attn_r, atol=2e-2, rtol=2e-2)

    print("KERNEL_OK")
</pallas_src>

<mosaic_0001>
module attributes {stable_mosaic.version = 11 : i64} {
  func.func @mha_kernel(%arg0: i32, %arg1: i32, %arg2: memref<1x8x32xf32, #tpu.memory_space<vmem>>, %arg3: memref<1x8x32xf32, #tpu.memory_space<vmem>>, %arg4: memref<1x8x32xf32, #tpu.memory_space<vmem>>, %arg5: memref<32x32xf32, #tpu.memory_space<vmem>>, %arg6: memref<32x32xf32, #tpu.memory_space<vmem>>, %arg7: memref<32x32xf32, #tpu.memory_space<vmem>>, %arg8: memref<4x8x32xf32, #tpu.memory_space<vmem>>, %arg9: memref<1x32xf32, #tpu.memory_space<vmem>>, %arg10: memref<1x32xf32, #tpu.memory_space<vmem>>, %arg11: memref<1x8x32xf32, #tpu.memory_space<vmem>>, %arg12: memref<1x4x8x8xf32, #tpu.memory_space<vmem>>, %arg13: memref<4x8x8xf32, #tpu.memory_space<vmem>>, %arg14: memref<4x8x8xf32, #tpu.memory_space<vmem>>) attributes {dimension_semantics = [#tpu.dimension_semantics<parallel>, #tpu.dimension_semantics<arbitrary>], iteration_bounds = array<i64: 2, 1>, scalar_prefetch = 0 : i64, scratch_operands = 2 : i64, tpu.core_type = #tpu.core_type<tc>, window_params = [{transform_indices = @transform_0, window_bounds = array<i64: 1, 8, 32>}, {transform_indices = @transform_1, window_bounds = array<i64: 1, 8, 32>}, {transform_indices = @transform_2, window_bounds = array<i64: 1, 8, 32>}, {pipeline_mode = #tpu.pipeline_mode<synchronous>, transform_indices = @transform_3, window_bounds = array<i64: 32, 32>}, {pipeline_mode = #tpu.pipeline_mode<synchronous>, transform_indices = @transform_4, window_bounds = array<i64: 32, 32>}, {pipeline_mode = #tpu.pipeline_mode<synchronous>, transform_indices = @transform_5, window_bounds = array<i64: 32, 32>}, {pipeline_mode = #tpu.pipeline_mode<synchronous>, transform_indices = @transform_6, window_bounds = array<i64: 4, 8, 32>}, {pipeline_mode = #tpu.pipeline_mode<synchronous>, transform_indices = @transform_7, window_bounds = array<i64: 1, 32>}, {pipeline_mode = #tpu.pipeline_mode<synchronous>, transform_indices = @transform_8, window_bounds = array<i64: 1, 32>}, {transform_indices = @transform_9, window_bounds = array<i64: 1, 8, 32>}, {transform_indices = @transform_10, window_bounds = array<i64: 1, 4, 8, 8>}]} {
    %c0_i32 = arith.constant 0 : i32
    %0 = arith.cmpi eq, %arg1, %c0_i32 : i32
    %1 = arith.extui %0 : i1 to i32
    %c0_i32_0 = arith.constant 0 : i32
    %2 = arith.cmpi ne, %1, %c0_i32_0 : i32
    scf.if %2 {
      %c0_36 = arith.constant 0 : index
      %c0_37 = arith.constant 0 : index
      %c0_38 = arith.constant 0 : index
      %57 = vector.load %arg3[%c0_36, %c0_37, %c0_38] : memref<1x8x32xf32, #tpu.memory_space<vmem>>, vector<1x8x32xf32>
      %58 = vector.shape_cast %57 : vector<1x8x32xf32> to vector<8x32xf32>
      %c0_39 = arith.constant 0 : index
      %c0_40 = arith.constant 0 : index
      %c0_41 = arith.constant 0 : index
      %59 = vector.load %arg4[%c0_39, %c0_40, %c0_41] : memref<1x8x32xf32, #tpu.memory_space<vmem>>, vector<1x8x32xf32>
      %60 = vector.shape_cast %59 : vector<1x8x32xf32> to vector<8x32xf32>
      %c0_42 = arith.constant 0 : index
      %c0_43 = arith.constant 0 : index
      %61 = vector.load %arg6[%c0_42, %c0_43] : memref<32x32xf32, #tpu.memory_space<vmem>>, vector<32x32xf32>
      %cst_44 = arith.constant dense<0.000000e+00> : vector<8x32xf32>
      %62 = tpu.matmul %58, %61, %cst_44 {dimension_numbers = #tpu.dot_dimension_numbers<[1], [0], [0], [1], [0, 0, 1, 1], [], []>} : vector<8x32xf32>, vector<32x32xf32>, vector<8x32xf32> -> vector<8x32xf32>
      %c0_45 = arith.constant 0 : index
      %c0_46 = arith.constant 0 : index
      %63 = vector.load %arg7[%c0_45, %c0_46] : memref<32x32xf32, #tpu.memory_space<vmem>>, vector<32x32xf32>
      %cst_47 = arith.constant dense<0.000000e+00> : vector<8x32xf32>
      %64 = tpu.matmul %60, %63, %cst_47 {dimension_numbers = #tpu.dot_dimension_numbers<[1], [0], [0], [1], [0, 0, 1, 1], [], []>} : vector<8x32xf32>, vector<32x32xf32>, vector<8x32xf32> -> vector<8x32xf32>
      %65 = vector.shape_cast %62 : vector<8x32xf32> to vector<8x4x8xf32>
      %66 = tpu.transpose %65, [1, 0, 2] : vector<8x4x8xf32> -> vector<4x8x8xf32>
      %c0_48 = arith.constant 0 : index
      %c0_49 = arith.constant 0 : index
      %c0_50 = arith.constant 0 : index
      %67 = vector.load %arg13[%c0_48, %c0_49, %c0_50] : memref<4x8x8xf32, #tpu.memory_space<vmem>>, vector<4x8x8xf32>
      tpu.vector_store %arg13[%c0_48, %c0_49, %c0_50], %66 {strides = array<i32>} : memref<4x8x8xf32, #tpu.memory_space<vmem>>, vector<4x8x8xf32>,
      %68 = vector.shape_cast %64 : vector<8x32xf32> to vector<8x4x8xf32>
      %69 = tpu.transpose %68, [1, 0, 2] : vector<8x4x8xf32> -> vector<4x8x8xf32>
      %c0_51 = arith.constant 0 : index
      %c0_52 = arith.constant 0 : index
      %c0_53 = arith.constant 0 : index
      %70 = vector.load %arg14[%c0_51, %c0_52, %c0_53] : memref<4x8x8xf32, #tpu.memory_space<vmem>>, vector<4x8x8xf32>
      tpu.vector_store %arg14[%c0_51, %c0_52, %c0_53], %69 {strides = array<i32>} : memref<4x8x8xf32, #tpu.memory_space<vmem>>, vector<4x8x8xf32>,
    } else {
    }
    %c0 = arith.constant 0 : index
    %c0_1 = arith.constant 0 : index
    %c0_2 = arith.constant 0 : index
    %3 = vector.load %arg2[%c0, %c0_1, %c0_2] : memref<1x8x32xf32, #tpu.memory_space<vmem>>, vector<1x8x32xf32>
    %4 = vector.shape_cast %3 : vector<1x8x32xf32> to vector<8x32xf32>
    %cst = arith.constant dense<0.000000e+00> : vector<8xf32>
    %5 = vector.multi_reduction <add>, %4, %cst [1] : vector<8x32xf32> to vector<8xf32>
    %6 = vector.shape_cast %5 : vector<8xf32> to vector<8x1xf32>
    %cst_3 = arith.constant 3.200000e+01 : f32
    %7 = vector.broadcast %cst_3 : f32 to vector<8x1xf32>
    %8 = arith.divf %6, %7 : vector<8x1xf32>
    %9 = vector.broadcast %8 : vector<8x1xf32> to vector<8x32xf32>
    %10 = arith.subf %4, %9 : vector<8x32xf32>
    %11 = arith.mulf %10, %10 : vector<8x32xf32>
    %cst_4 = arith.constant dense<0.000000e+00> : vector<8xf32>
    %12 = vector.multi_reduction <add>, %11, %cst_4 [1] : vector<8x32xf32> to vector<8xf32>
    %13 = vector.shape_cast %12 : vector<8xf32> to vector<8x1xf32>
    %cst_5 = arith.constant 3.200000e+01 : f32
    %14 = vector.broadcast %cst_5 : f32 to vector<8x1xf32>
    %15 = arith.divf %13, %14 : vector<8x1xf32>
    %16 = vector.broadcast %8 : vector<8x1xf32> to vector<8x32xf32>
    %17 = arith.subf %4, %16 : vector<8x32xf32>
    %cst_6 = arith.constant 9.99999997E-7 : f32
    %18 = vector.broadcast %cst_6 : f32 to vector<8x1xf32>
    %19 = arith.addf %15, %18 : vector<8x1xf32>
    %20 = math.rsqrt %19 : vector<8x1xf32>
    %21 = vector.broadcast %20 : vector<8x1xf32> to vector<8x32xf32>
    %22 = arith.mulf %17, %21 : vector<8x32xf32>
    %c0_7 = arith.constant 0 : index
    %c0_8 = arith.constant 0 : index
    %23 = vector.load %arg9[%c0_7, %c0_8] : memref<1x32xf32, #tpu.memory_space<vmem>>, vector<1x32xf32>
    %24 = vector.broadcast %23 : vector<1x32xf32> to vector<8x32xf32>
    %25 = arith.mulf %22, %24 : vector<8x32xf32>
    %c0_9 = arith.constant 0 : index
    %c0_10 = arith.constant 0 : index
    %26 = vector.load %arg10[%c0_9, %c0_10] : memref<1x32xf32, #tpu.memory_space<vmem>>, vector<1x32xf32>
    %27 = vector.broadcast %26 : vector<1x32xf32> to vector<8x32xf32>
    %28 = arith.addf %25, %27 : vector<8x32xf32>
    %c0_11 = arith.constant 0 : index
    %c0_12 = arith.constant 0 : index
    %29 = vector.load %arg5[%c0_11, %c0_12] : memref<32x32xf32, #tpu.memory_space<vmem>>, vector<32x32xf32>
    %cst_13 = arith.constant dense<0.000000e+00> : vector<8x32xf32>
    %30 = tpu.matmul %28, %29, %cst_13 {dimension_numbers = #tpu.dot_dimension_numbers<[1], [0], [0], [1], [0, 0, 1, 1], [], []>} : vector<8x32xf32>, vector<32x32xf32>, vector<8x32xf32> -> vector<8x32xf32>
    %31 = vector.shape_cast %30 : vector<8x32xf32> to vector<8x4x8xf32>
    %32 = tpu.transpose %31, [1, 0, 2] : vector<8x4x8xf32> -> vector<4x8x8xf32>
    %c0_14 = arith.constant 0 : index
    %c0_15 = arith.constant 0 : index
    %c0_16 = arith.constant 0 : index
    %33 = vector.load %arg13[%c0_14, %c0_15, %c0_16] : memref<4x8x8xf32, #tpu.memory_space<vmem>>, vector<4x8x8xf32>
    "tpu.trace_start"() <{level = 10 : i32, message = "hqd,hkd->hqk"}> : () -> ()
    %cst_17 = arith.constant dense<0.000000e+00> : vector<4x8x8xf32>
    %34 = tpu.matmul %32, %33, %cst_17 {dimension_numbers = #tpu.dot_dimension_numbers<[2], [2], [1], [1], [0, 0, 0, 1, 1, 1], [0], [0]>} : vector<4x8x8xf32>, vector<4x8x8xf32>, vector<4x8x8xf32> -> vector<4x8x8xf32>
    "tpu.trace_stop"() : () -> ()
    %cst_18 = arith.constant dense<0xFF800000> : vector<4x8xf32>
    %35 = vector.multi_reduction <maximumf>, %34, %cst_18 [2] : vector<4x8x8xf32> to vector<4x8xf32>
    %36 = vector.shape_cast %35 : vector<4x8xf32> to vector<4x8x1xf32>
    %37 = vector.broadcast %36 : vector<4x8x1xf32> to vector<4x8x8xf32>
    %38 = arith.subf %34, %37 : vector<4x8x8xf32>
    %39 = math.exp %38 : vector<4x8x8xf32>
    %cst_19 = arith.constant dense<0.000000e+00> : vector<4x8xf32>
    %40 = vector.multi_reduction <add>, %39, %cst_19 [2] : vector<4x8x8xf32> to vector<4x8xf32>
    %41 = vector.shape_cast %40 : vector<4x8xf32> to vector<4x8x1xf32>
    %42 = tpu.reciprocal %41 {approx = true} : vector<4x8x1xf32> -> vector<4x8x1xf32>
    %43 = vector.broadcast %42 : vector<4x8x1xf32> to vector<4x8x8xf32>
    %44 = arith.mulf %39, %43 : vector<4x8x8xf32>
    %c0_20 = arith.constant 0 : index
    %c0_21 = arith.constant 0 : index
    %c0_22 = arith.constant 0 : index
    %c0_23 = arith.constant 0 : index
    %45 = vector.load %arg12[%c0_20, %c0_21, %c0_22, %c0_23] : memref<1x4x8x8xf32, #tpu.memory_space<vmem>>, vector<1x4x8x8xf32>
    %46 = vector.shape_cast %45 : vector<1x4x8x8xf32> to vector<4x8x8xf32>
    %47 = vector.shape_cast %44 : vector<4x8x8xf32> to vector<1x4x8x8xf32>
    tpu.vector_store %arg12[%c0_20, %c0_21, %c0_22, %c0_23], %47 {strides = array<i32>} : memref<1x4x8x8xf32, #tpu.memory_space<vmem>>, vector<1x4x8x8xf32>,
    %c0_24 = arith.constant 0 : index
    %c0_25 = arith.constant 0 : index
    %c0_26 = arith.constant 0 : index
    %48 = vector.load %arg14[%c0_24, %c0_25, %c0_26] : memref<4x8x8xf32, #tpu.memory_space<vmem>>, vector<4x8x8xf32>
    "tpu.trace_start"() <{level = 10 : i32, message = "hqk,hkd->hqd"}> : () -> ()
    %cst_27 = arith.constant dense<0.000000e+00> : vector<4x8x8xf32>
    %49 = tpu.matmul %44, %48, %cst_27 {dimension_numbers = #tpu.dot_dimension_numbers<[2], [1], [1], [2], [0, 0, 0, 1, 1, 2], [0], [0]>} : vector<4x8x8xf32>, vector<4x8x8xf32>, vector<4x8x8xf32> -> vector<4x8x8xf32>
    "tpu.trace_stop"() : () -> ()
    %c0_28 = arith.constant 0 : index
    %c0_29 = arith.constant 0 : index
    %c0_30 = arith.constant 0 : index
    %50 = vector.load %arg8[%c0_28, %c0_29, %c0_30] : memref<4x8x32xf32, #tpu.memory_space<vmem>>, vector<4x8x32xf32>
    "tpu.trace_start"() <{level = 10 : i32, message = "hqd,hdm->hqm"}> : () -> ()
    %cst_31 = arith.constant dense<0.000000e+00> : vector<4x8x32xf32>
    %51 = tpu.matmul %49, %50, %cst_31 {dimension_numbers = #tpu.dot_dimension_numbers<[2], [1], [1], [2], [0, 0, 0, 1, 1, 2], [0], [0]>} : vector<4x8x8xf32>, vector<4x8x32xf32>, vector<4x8x32xf32> -> vector<4x8x32xf32>
    "tpu.trace_stop"() : () -> ()
    %cst_32 = arith.constant dense<0.000000e+00> : vector<8x32xf32>
    %52 = vector.multi_reduction <add>, %51, %cst_32 [0] : vector<4x8x32xf32> to vector<8x32xf32>
    %53 = arith.addf %52, %4 : vector<8x32xf32>
    %c0_33 = arith.constant 0 : index
    %c0_34 = arith.constant 0 : index
    %c0_35 = arith.constant 0 : index
    %54 = vector.load %arg11[%c0_33, %c0_34, %c0_35] : memref<1x8x32xf32, #tpu.memory_space<vmem>>, vector<1x8x32xf32>
    %55 = vector.shape_cast %54 : vector<1x8x32xf32> to vector<8x32xf32>
    %56 = vector.shape_cast %53 : vector<8x32xf32> to vector<1x8x32xf32>
    tpu.vector_store %arg11[%c0_33, %c0_34, %c0_35], %56 {strides = array<i32>} : memref<1x8x32xf32, #tpu.memory_space<vmem>>, vector<1x8x32xf32>,
    return
  }
  func.func @transform_0(%arg0: i32, %arg1: i32) -> (i32, i32, i32) {
    %c0_i32 = arith.constant 0 : i32
    %c0_i32_0 = arith.constant 0 : i32
    return %arg0, %arg1, %c0_i32 : i32, i32, i32
  }
  func.func @transform_1(%arg0: i32, %arg1: i32) -> (i32, i32, i32) {
    %c0_i32 = arith.constant 0 : i32
    %c0_i32_0 = arith.constant 0 : i32
    %c0_i32_1 = arith.constant 0 : i32
    return %arg0, %c0_i32, %c0_i32_0 : i32, i32, i32
  }
  func.func @transform_2(%arg0: i32, %arg1: i32) -> (i32, i32, i32) {
    %c0_i32 = arith.constant 0 : i32
    %c0_i32_0 = arith.constant 0 : i32
    %c0_i32_1 = arith.constant 0 : i32
    return %arg0, %c0_i32, %c0_i32_0 : i32, i32, i32
  }
  func.func @transform_3(%arg0: i32, %arg1: i32) -> (i32, i32) {
    %c0_i32 = arith.constant 0 : i32
    %c0_i32_0 = arith.constant 0 : i32
    %c0_i32_1 = arith.constant 0 : i32
    return %c0_i32, %c0_i32_0 : i32, i32
  }
  func.func @transform_4(%arg0: i32, %arg1: i32) -> (i32, i32) {
    %c0_i32 = arith.constant 0 : i32
    %c0_i32_0 = arith.constant 0 : i32
    %c0_i32_1 = arith.constant 0 : i32
    return %c0_i32, %c0_i32_0 : i32, i32
  }
  func.func @transform_5(%arg0: i32, %arg1: i32) -> (i32, i32) {
    %c0_i32 = arith.constant 0 : i32
    %c0_i32_0 = arith.constant 0 : i32
    %c0_i32_1 = arith.constant 0 : i32
    return %c0_i32, %c0_i32_0 : i32, i32
  }
  func.func @transform_6(%arg0: i32, %arg1: i32) -> (i32, i32, i32) {
    %c0_i32 = arith.constant 0 : i32
    %c0_i32_0 = arith.constant 0 : i32
    %c0_i32_1 = arith.constant 0 : i32
    %c0_i32_2 = arith.constant 0 : i32
    return %c0_i32, %c0_i32_0, %c0_i32_1 : i32, i32, i32
  }
  func.func @transform_7(%arg0: i32, %arg1: i32) -> (i32, i32) {
    %c0_i32 = arith.constant 0 : i32
    %c0_i32_0 = arith.constant 0 : i32
    %c0_i32_1 = arith.constant 0 : i32
    return %c0_i32, %c0_i32_0 : i32, i32
  }
  func.func @transform_8(%arg0: i32, %arg1: i32) -> (i32, i32) {
    %c0_i32 = arith.constant 0 : i32
    %c0_i32_0 = arith.constant 0 : i32
    %c0_i32_1 = arith.constant 0 : i32
    return %c0_i32, %c0_i32_0 : i32, i32
  }
  func.func @transform_9(%arg0: i32, %arg1: i32) -> (i32, i32, i32) {
    %c0_i32 = arith.constant 0 : i32
    %c0_i32_0 = arith.constant 0 : i32
    return %arg0, %arg1, %c0_i32 : i32, i32, i32
  }
  func.func @transform_10(%arg0: i32, %arg1: i32) -> (i32, i32, i32, i32) {
    %c0_i32 = arith.constant 0 : i32
    %c0_i32_0 = arith.constant 0 : i32
    %c0_i32_1 = arith.constant 0 : i32
    return %arg0, %c0_i32, %arg1, %c0_i32_0 : i32, i32, i32, i32
  }
}

</mosaic_0001>

<llo_original>
// kernel: tpu_custom_call.1
$region0: #{tpu_custom_call.1}
  #allocation0 [shape = 'u32[]', space=smem, size = 0x4, offset = 0x4, fixed_abs, tag = 'smem constant byte address 0x4 - core index']
  #allocation1 [shape = 'u32[144,128]{1,0:T(1,128)}', space=vmem, size = 0x12000, scoped, tag = 'internal scratch']
  #allocation2 [shape = 'f32[4,8,8]{2,1,0:T(8,128)}', space=vmem, size = 0x4000, scoped, tag = 'scratch operand']
  #allocation3 [shape = 'f32[4,8,8]{2,1,0:T(8,128)}', space=vmem, size = 0x4000, scoped, tag = 'scratch operand']
  %s0 = inlined_call_operand.hbm [shape: f32[2,8,32], index: 0, kind: input, shape index: {}]
  %s1 = inlined_call_operand.hbm [shape: f32[2,8,32], index: 1, kind: input, shape index: {}]
  %s2 = inlined_call_operand.hbm [shape: f32[2,8,32], index: 2, kind: input, shape index: {}]
  %s3 = inlined_call_operand.hbm [shape: f32[32,32], index: 3, kind: input, shape index: {}]
  %s4 = inlined_call_operand.hbm [shape: f32[32,32], index: 4, kind: input, shape index: {}]
  %s5 = inlined_call_operand.hbm [shape: f32[32,32], index: 5, kind: input, shape index: {}]
  %s6 = inlined_call_operand.hbm [shape: f32[4,8,32], index: 6, kind: input, shape index: {}]
  %s7 = inlined_call_operand.vmem [shape: f32[1,32], index: 7, kind: input, shape index: {}]
  %s8 = inlined_call_operand.vmem [shape: f32[1,32], index: 8, kind: input, shape index: {}]
  %s9 = inlined_call_operand.hbm [shape: f32[2,8,32], index: 9, kind: output, shape index: {0}]
  %s10 = inlined_call_operand.hbm [shape: f32[2,4,8,8], index: 10, kind: output, shape index: {1}]
  %11 = xla_tuple %s9, %s10
  %s12 = sld [smem:[#allocation0]]
  $region109: #{tpu_custom_call.1} parent=0
    _
  %s14 = ssub.s32 1, %s12
  %s15 = scalar_select 0, %s14, %s12
  $region1: #{tpu_custom_call.1} parent=0
    #allocation4 [shape = 'u8[8192]{0}', space=vmem, size = 0x2000, scoped, tag = 'input window, operand 0']
    #allocation5 [shape = 's32[2]{0}', space=sflag, size = 0x8, scoped, tag = 'scoped memory for tpu_custom_call.1']
    #allocation6 [shape = 's32[2]{0}', space=sflag, size = 0x8, scoped, tag = 'scoped memory for tpu_custom_call.1']
    #allocation7 [shape = 'u8[8192]{0}', space=vmem, size = 0x2000, scoped, tag = 'input window, operand 1']
    #allocation8 [shape = 's32[2]{0}', space=sflag, size = 0x8, scoped, tag = 'scoped memory for tpu_custom_call.1']
    #allocation9 [shape = 'u8[8192]{0}', space=vmem, size = 0x2000, scoped, tag = 'input window, operand 2']
    #allocation10 [shape = 'u8[16384]{0}', space=vmem, size = 0x4000, scoped, tag = 'input window, operand 3, single buffered']
    #allocation11 [shape = 's32[1]{0}', space=sflag, size = 0x4, scoped, tag = 'scoped memory for tpu_custom_call.1']
    #allocation12 [shape = 'u8[16384]{0}', space=vmem, size = 0x4000, scoped, tag = 'input window, operand 4, single buffered']
    #allocation13 [shape = 'u8[16384]{0}', space=vmem, size = 0x4000, scoped, tag = 'input window, operand 5, single buffered']
    #allocation14 [shape = 's32[1]{0}', space=sflag, size = 0x4, scoped, tag = 'scoped memory for tpu_custom_call.1']
    #allocation15 [shape = 'u8[16384]{0}', space=vmem, size = 0x4000, scoped, tag = 'input window, operand 6, single buffered']
    #allocation16 [shape = 'u8[8192]{0}', space=vmem, size = 0x2000, scoped, tag = 'output window, operand 0']
    #allocation17 [shape = 'u8[32768]{0}', space=vmem, size = 0x8000, scoped, tag = 'output window, operand 1']
    #allocation18 [shape = 's32[2]{0}', space=sflag, size = 0x8, scoped, tag = 'scoped memory for tpu_custom_call.1']
    %16 = vsyncpa [#allocation5], 0
    %s17 = scalar_lea.sflag [#allocation5], 1
    %18 = vsyncpa %s17, 0
    %19 = vsyncpa [#allocation8], 0
    %s20 = scalar_lea.sflag [#allocation8], 1
    %21 = vsyncpa %s20, 0
    %22 = vsyncpa [#allocation11], 0
    %23 = vsyncpa [#allocation14], 0
    %24 = vsyncpa [#allocation6], 0
    %s25 = scalar_lea.sflag [#allocation6], 1
    %26 = vsyncpa %s25, 0
    %27 = vsyncpa [#allocation18], 0
    %s28 = scalar_lea.sflag [#allocation18], 1
    %29 = vsyncpa %s28, 0
    loop: start=0, step=1, limit=4
    $region2: #{tpu_custom_call.1} parent=1 // loop_pre_header
      _
    $region3: #{tpu_custom_call.1} parent=1 // loop_header
      %s31 = sphi 0, %s35
      %p32 = scmp.ge.s32.totalorder %s31, 4
      %s38 = sphi 0, %s50
      %s39 = sphi 0, %s46
      %s40 = sphi 0, %s38
      %s41 = sphi 0, %s39
      %s42 = sphi 0, %s40
      %s43 = sphi 0, %s41
      %s55 = sphi 0, %s57
      %s58 = sphi 0, %s55
      %s59 = sphi 0, %s58
      %s75 = sphi 0, %s59
      %s81 = sphi 0, %s83
      %s84 = sphi 0, %s81
      %s85 = sphi 0, %s84
      %s101 = sphi 0, %s85
      %s107 = sphi 0, %s109
      %s110 = sphi 0, %s107
      %s111 = sphi 0, %s110
      %s127 = sphi 0, %s111
      %s131 = sphi 0, %s131
      %s133 = sphi 0, %s131
      %s134 = sphi 0, %s133
      %s148 = sphi 0, %s134
      %s152 = sphi 0, %s152
      %s154 = sphi 0, %s152
      %s155 = sphi 0, %s154
      %s169 = sphi 0, %s155
      %s173 = sphi 0, %s173
      %s175 = sphi 0, %s173
      %s176 = sphi 0, %s175
      %s190 = sphi 0, %s176
      %s194 = sphi 0, %s194
      %s196 = sphi 0, %s194
      %s197 = sphi 0, %s196
      %s211 = sphi 0, %s197
      %s215 = sphi 0, %s215
      %s217 = sphi 0, %s215
      %s218 = sphi 0, %s217
      %s232 = sphi 0, %s218
      %s236 = sphi 0, %s236
      %s238 = sphi 0, %s236
      %s239 = sphi 0, %s238
      %s253 = sphi 0, %s239
      %s261 = sphi 0, %s263
      %s264 = sphi 0, %s261
      %s265 = sphi 0, %s264
      %s281 = sphi 0, %s265
      %s289 = sphi 0, %s291
      %s292 = sphi 0, %s289
      %s293 = sphi 0, %s292
      %s309 = sphi 0, %s293
    $region4: #{tpu_custom_call.1} parent=1 // loop_header_branch
      %34 = sbr.rel (%p32) target = $region8
    $region5: #{tpu_custom_call.1} parent=1 // loop_body
      %s36 = ssub.s32 %s31, 1
      %s37 = ssub.s32 %s31, 2
      %s44 = sadd.s32 1, %s39
      %p45 = scmp.ge.s32.totalorder %s44, 1
      %s46 = scalar_select %p45, 0, %s44
      %s47 = sadd.s32 1, %s38
      %s48 = scalar_select %p45, %s47, %s38
      %p49 = scmp.ge.s32.totalorder %s48, 2
      %s50 = scalar_select %p49, 0, %s48
      %s51 = ssub.s32 %s38, %s50
      %s52 = ssub.s32 %s39, %s46
      %s53 = sor.u32 %s51, %s52
      %p54 = scmp.eq.s32.totalorder %s53, 0
      %s56 = sadd.s32 %s55, 1
      %s57 = scalar_select %p54, %s55, %s56
      %p60 = pneg %p54
      %p61 = scmp.eq.s32.totalorder %s31, 1
      %p62 = por %p60, %p61
      %p63 = scmp.ne.s32.totalorder %s55, %s58
      %p64 = scmp.eq.s32.totalorder %s31, 0
      %p65 = por %p63, %p64
      %p66 = scmp.ne.s32.totalorder %s55, %s58
      %p67 = scmp.eq.s32.totalorder %s36, 1
      %p68 = por %p66, %p67
      %p69 = scmp.ne.s32.totalorder %s58, %s59
      %p70 = scmp.eq.s32.totalorder %s36, 0
      %p71 = por %p69, %p70
      %p72 = scmp.ne.s32.totalorder %s58, %s59
      %p73 = scmp.eq.s32.totalorder %s37, 1
      %p74 = por %p72, %p73
      %p76 = scmp.ne.s32.totalorder %s59, %s75
      %p77 = scmp.eq.s32.totalorder %s37, 0
      %p78 = por %p76, %p77
      %s79 = ssub.s32 %s38, %s50
      %p80 = scmp.eq.s32.totalorder %s79, 0
      %s82 = sadd.s32 %s81, 1
      %s83 = scalar_select %p80, %s81, %s82
      %p86 = pneg %p80
      %p87 = scmp.eq.s32.totalorder %s31, 1
      %p88 = por %p86, %p87
      %p89 = scmp.ne.s32.totalorder %s81, %s84
      %p90 = scmp.eq.s32.totalorder %s31, 0
      %p91 = por %p89, %p90
      %p92 = scmp.ne.s32.totalorder %s81, %s84
      %p93 = scmp.eq.s32.totalorder %s36, 1
      %p94 = por %p92, %p93
      %p95 = scmp.ne.s32.totalorder %s84, %s85
      %p96 = scmp.eq.s32.totalorder %s36, 0
      %p97 = por %p95, %p96
      %p98 = scmp.ne.s32.totalorder %s84, %s85
      %p99 = scmp.eq.s32.totalorder %s37, 1
      %p100 = por %p98, %p99
      %p102 = scmp.ne.s32.totalorder %s85, %s101
      %p103 = scmp.eq.s32.totalorder %s37, 0
      %p104 = por %p102, %p103
      %s105 = ssub.s32 %s38, %s50
      %p106 = scmp.eq.s32.totalorder %s105, 0
      %s108 = sadd.s32 %s107, 1
      %s109 = scalar_select %p106, %s107, %s108
      %p112 = pneg %p106
      %p113 = scmp.eq.s32.totalorder %s31, 1
      %p114 = por %p112, %p113
      %p115 = scmp.ne.s32.totalorder %s107, %s110
      %p116 = scmp.eq.s32.totalorder %s31, 0
      %p117 = por %p115, %p116
      %p118 = scmp.ne.s32.totalorder %s107, %s110
      %p119 = scmp.eq.s32.totalorder %s36, 1
      %p120 = por %p118, %p119
      %p121 = scmp.ne.s32.totalorder %s110, %s111
      %p122 = scmp.eq.s32.totalorder %s36, 0
      %p123 = por %p121, %p122
      %p124 = scmp.ne.s32.totalorder %s110, %s111
      %p125 = scmp.eq.s32.totalorder %s37, 1
      %p126 = por %p124, %p125
      %p128 = scmp.ne.s32.totalorder %s111, %s127
      %p129 = scmp.eq.s32.totalorder %s37, 0
      %p130 = por %p128, %p129
      %s132 = sadd.s32 %s131, 1
      %p135 = scmp.eq.s32.totalorder %s31, 1
      %p136 = scmp.ne.s32.totalorder %s131, %s133
      %p137 = scmp.eq.s32.totalorder %s31, 0
      %p138 = por %p136, %p137
      %p139 = scmp.ne.s32.totalorder %s131, %s133
      %p140 = scmp.eq.s32.totalorder %s36, 1
      %p141 = por %p139, %p140
      %p142 = scmp.ne.s32.totalorder %s133, %s134
      %p143 = scmp.eq.s32.totalorder %s36, 0
      %p144 = por %p142, %p143
      %p145 = scmp.ne.s32.totalorder %s133, %s134
      %p146 = scmp.eq.s32.totalorder %s37, 1
      %p147 = por %p145, %p146
      %p149 = scmp.ne.s32.totalorder %s134, %s148
      %p150 = scmp.eq.s32.totalorder %s37, 0
      %p151 = por %p149, %p150
      %s153 = sadd.s32 %s152, 1
      %p156 = scmp.eq.s32.totalorder %s31, 1
      %p157 = scmp.ne.s32.totalorder %s152, %s154
      %p158 = scmp.eq.s32.totalorder %s31, 0
      %p159 = por %p157, %p158
      %p160 = scmp.ne.s32.totalorder %s152, %s154
      %p161 = scmp.eq.s32.totalorder %s36, 1
      %p162 = por %p160, %p161
      %p163 = scmp.ne.s32.totalorder %s154, %s155
      %p164 = scmp.eq.s32.totalorder %s36, 0
      %p165 = por %p163, %p164
      %p166 = scmp.ne.s32.totalorder %s154, %s155
      %p167 = scmp.eq.s32.totalorder %s37, 1
      %p168 = por %p166, %p167
      %p170 = scmp.ne.s32.totalorder %s155, %s169
      %p171 = scmp.eq.s32.totalorder %s37, 0
      %p172 = por %p170, %p171
      %s174 = sadd.s32 %s173, 1
      %p177 = scmp.eq.s32.totalorder %s31, 1
      %p178 = scmp.ne.s32.totalorder %s173, %s175
      %p179 = scmp.eq.s32.totalorder %s31, 0
      %p180 = por %p178, %p179
      %p181 = scmp.ne.s32.totalorder %s173, %s175
      %p182 = scmp.eq.s32.totalorder %s36, 1
      %p183 = por %p181, %p182
      %p184 = scmp.ne.s32.totalorder %s175, %s176
      %p185 = scmp.eq.s32.totalorder %s36, 0
      %p186 = por %p184, %p185
      %p187 = scmp.ne.s32.totalorder %s175, %s176
      %p188 = scmp.eq.s32.totalorder %s37, 1
      %p189 = por %p187, %p188
      %p191 = scmp.ne.s32.totalorder %s176, %s190
      %p192 = scmp.eq.s32.totalorder %s37, 0
      %p193 = por %p191, %p192
      %s195 = sadd.s32 %s194, 1
      %p198 = scmp.eq.s32.totalorder %s31, 1
      %p199 = scmp.ne.s32.totalorder %s194, %s196
      %p200 = scmp.eq.s32.totalorder %s31, 0
      %p201 = por %p199, %p200
      %p202 = scmp.ne.s32.totalorder %s194, %s196
      %p203 = scmp.eq.s32.totalorder %s36, 1
      %p204 = por %p202, %p203
      %p205 = scmp.ne.s32.totalorder %s196, %s197
      %p206 = scmp.eq.s32.totalorder %s36, 0
      %p207 = por %p205, %p206
      %p208 = scmp.ne.s32.totalorder %s196, %s197
      %p209 = scmp.eq.s32.totalorder %s37, 1
      %p210 = por %p208, %p209
      %p212 = scmp.ne.s32.totalorder %s197, %s211
      %p213 = scmp.eq.s32.totalorder %s37, 0
      %p214 = por %p212, %p213
      %s216 = sadd.s32 %s215, 1
      %p219 = scmp.eq.s32.totalorder %s31, 1
      %p220 = scmp.ne.s32.totalorder %s215, %s217
      %p221 = scmp.eq.s32.totalorder %s31, 0
      %p222 = por %p220, %p221
      %p223 = scmp.ne.s32.totalorder %s215, %s217
      %p224 = scmp.eq.s32.totalorder %s36, 1
      %p225 = por %p223, %p224
      %p226 = scmp.ne.s32.totalorder %s217, %s218
      %p227 = scmp.eq.s32.totalorder %s36, 0
      %p228 = por %p226, %p227
      %p229 = scmp.ne.s32.totalorder %s217, %s218
      %p230 = scmp.eq.s32.totalorder %s37, 1
      %p231 = por %p229, %p230
      %p233 = scmp.ne.s32.totalorder %s218, %s232
      %p234 = scmp.eq.s32.totalorder %s37, 0
      %p235 = por %p233, %p234
      %s237 = sadd.s32 %s236, 1
      %p240 = scmp.eq.s32.totalorder %s31, 1
      %p241 = scmp.ne.s32.totalorder %s236, %s238
      %p242 = scmp.eq.s32.totalorder %s31, 0
      %p243 = por %p241, %p242
      %p244 = scmp.ne.s32.totalorder %s236, %s238
      %p245 = scmp.eq.s32.totalorder %s36, 1
      %p246 = por %p244, %p245
      %p247 = scmp.ne.s32.totalorder %s238, %s239
      %p248 = scmp.eq.s32.totalorder %s36, 0
      %p249 = por %p247, %p248
      %p250 = scmp.ne.s32.totalorder %s238, %s239
      %p251 = scmp.eq.s32.totalorder %s37, 1
      %p252 = por %p250, %p251
      %p254 = scmp.ne.s32.totalorder %s239, %s253
      %p255 = scmp.eq.s32.totalorder %s37, 0
      %p256 = por %p254, %p255
      %s257 = ssub.s32 %s38, %s50
      %s258 = ssub.s32 %s39, %s46
      %s259 = sor.u32 %s257, %s258
      %p260 = scmp.eq.s32.totalorder %s259, 0
      %s262 = sadd.s32 %s261, 1
      %s263 = scalar_select %p260, %s261, %s262
      %p266 = pneg %p260
      %p267 = scmp.eq.s32.totalorder %s31, 1
      %p268 = por %p266, %p267
      %p269 = scmp.ne.s32.totalorder %s261, %s264
      %p270 = scmp.eq.s32.totalorder %s31, 0
      %p271 = por %p269, %p270
      %p272 = scmp.ne.s32.totalorder %s261, %s264
      %p273 = scmp.eq.s32.totalorder %s36, 1
      %p274 = por %p272, %p273
      %p275 = scmp.ne.s32.totalorder %s264, %s265
      %p276 = scmp.eq.s32.totalorder %s36, 0
      %p277 = por %p275, %p276
      %p278 = scmp.ne.s32.totalorder %s264, %s265
      %p279 = scmp.eq.s32.totalorder %s37, 1
      %p280 = por %p278, %p279
      %p282 = scmp.ne.s32.totalorder %s265, %s281
      %p283 = scmp.eq.s32.totalorder %s37, 0
      %p284 = por %p282, %p283
      %s285 = ssub.s32 %s38, %s50
      %s286 = ssub.s32 %s39, %s46
      %s287 = sor.u32 %s285, %s286
      %p288 = scmp.eq.s32.totalorder %s287, 0
      %s290 = sadd.s32 %s289, 1
      %s291 = scalar_select %p288, %s289, %s290
      %p294 = pneg %p288
      %p295 = scmp.eq.s32.totalorder %s31, 1
      %p296 = por %p294, %p295
      %p297 = scmp.ne.s32.totalorder %s289, %s292
      %p298 = scmp.eq.s32.totalorder %s31, 0
      %p299 = por %p297, %p298
      %p300 = scmp.ne.s32.totalorder %s289, %s292
      %p301 = scmp.eq.s32.totalorder %s36, 1
      %p302 = por %p300, %p301
      %p303 = scmp.ne.s32.totalorder %s292, %s293
      %p304 = scmp.eq.s32.totalorder %s36, 0
      %p305 = por %p303, %p304
      %p306 = scmp.ne.s32.totalorder %s292, %s293
      %p307 = scmp.eq.s32.totalorder %s37, 1
      %p308 = por %p306, %p307
      %p310 = scmp.ne.s32.totalorder %s293, %s309
      %p311 = scmp.eq.s32.totalorder %s37, 0
      %p312 = por %p310, %p311
      %p313 = scmp.le.s32.totalorder 1, %s31
      %p314 = scmp.lt.s32.totalorder %s31, 3
      %p315 = pnand %p313, %p314
      %p316 = pneg %p315
      // Predicated region
      $region9: #{tpu_custom_call.1} parent=5 // pred_check
        _
      $region10: #{tpu_custom_call.1} parent=5 // pred_check_branch
        %318 = sbr.rel (%p315) target = $region12
      $region11: #{tpu_custom_call.1} parent=5 // pred_region
        %s319 = ssub.s32 %s31, 1
        // Predicated region
        $region13: #{tpu_custom_call.1} parent=11 // pred_check
          %p320 = pneg %p144
        $region14: #{tpu_custom_call.1} parent=11 // pred_check_branch
          %322 = sbr.rel (%p320) target = $region16
        $region15: #{tpu_custom_call.1} parent=11 // pred_region
          %s324 = ssub.s32 512, 512
          %325 = vsyncadd [#allocation11], %s324
          %s326 = sshll.u32 [#allocation10], 4
          %s327 = int_to_ptr.vmem [resolvable:$true] %s326
          %332 = dma.hbm_to_vmem [thread:$0]  %s3, 512, %s327, [#allocation11], 128, 128, 8
        $region16: #{tpu_custom_call.1} parent=11 // pred_fallthru
          _
        // Predicated region
        $region17: #{tpu_custom_call.1} parent=11 // pred_check
          %p333 = pneg %p165
        $region18: #{tpu_custom_call.1} parent=11 // pred_check_branch
          %335 = sbr.rel (%p333) target = $region20
        $region19: #{tpu_custom_call.1} parent=11 // pred_region
          %s337 = ssub.s32 512, 512
          %338 = vsyncadd [#allocation11], %s337
          %s339 = sshll.u32 [#allocation12], 4
          %s340 = int_to_ptr.vmem [resolvable:$true] %s339
          %345 = dma.hbm_to_vmem [thread:$0]  %s4, 512, %s340, [#allocation11], 128, 128, 8
        $region20: #{tpu_custom_call.1} parent=11 // pred_fallthru
          _
        // Predicated region
        $region21: #{tpu_custom_call.1} parent=11 // pred_check
          %p346 = pneg %p186
        $region22: #{tpu_custom_call.1} parent=11 // pred_check_branch
          %348 = sbr.rel (%p346) target = $region24
        $region23: #{tpu_custom_call.1} parent=11 // pred_region
          %s350 = ssub.s32 512, 512
          %351 = vsyncadd [#allocation14], %s350
          %s352 = sshll.u32 [#allocation13], 4
          %s353 = int_to_ptr.vmem [resolvable:$true] %s352
          %358 = dma.hbm_to_vmem [thread:$0]  %s5, 512, %s353, [#allocation14], 128, 128, 8
        $region24: #{tpu_custom_call.1} parent=11 // pred_fallthru
          _
        // Predicated region
        $region25: #{tpu_custom_call.1} parent=11 // pred_check
          %p359 = pneg %p207
        $region26: #{tpu_custom_call.1} parent=11 // pred_check_branch
          %361 = sbr.rel (%p359) target = $region28
        $region27: #{tpu_custom_call.1} parent=11 // pred_region
          %s363 = ssub.s32 512, 512
          %364 = vsyncadd [#allocation14], %s363
          %s365 = sshll.u32 [#allocation15], 4
          %s366 = int_to_ptr.vmem [resolvable:$true] %s365
          %371 = dma.hbm_to_vmem [thread:$0]  %s6, 512, %s366, [#allocation14], 128, 128, 8
        $region28: #{tpu_custom_call.1} parent=11 // pred_fallthru
          _
        // Predicated region
        $region29: #{tpu_custom_call.1} parent=11 // pred_check
          %p372 = pneg %p228
        $region30: #{tpu_custom_call.1} parent=11 // pred_check_branch
          %374 = sbr.rel (%p372) target = $region32
        $region31: #{tpu_custom_call.1} parent=11 // pred_region
          _
        $region32: #{tpu_custom_call.1} parent=11 // pred_fallthru
          _
        // Predicated region
        $region33: #{tpu_custom_call.1} parent=11 // pred_check
          %p375 = pneg %p249
        $region34: #{tpu_custom_call.1} parent=11 // pred_check_branch
          %377 = sbr.rel (%p375) target = $region36
        $region35: #{tpu_custom_call.1} parent=11 // pred_region
          _
        $region36: #{tpu_custom_call.1} parent=11 // pred_fallthru
          _
      $region12: #{tpu_custom_call.1} parent=5 // pred_fallthru
        _
      %p378 = scmp.lt.s32.totalorder %s31, 2
      // Predicated region
      $region37: #{tpu_custom_call.1} parent=5 // pred_check
        %p379 = pneg %p378
      $region38: #{tpu_custom_call.1} parent=5 // pred_check_branch
        %381 = sbr.rel (%p379) target = $region40
      $region39: #{tpu_custom_call.1} parent=5 // pred_region
        // Predicated region
        $region41: #{tpu_custom_call.1} parent=39 // pred_check
          %p382 = pneg %p65
        $region42: #{tpu_custom_call.1} parent=39 // pred_check_branch
          %384 = sbr.rel (%p382) target = $region44
        $region43: #{tpu_custom_call.1} parent=39 // pred_region
          %s385 = sand.u32 %s55, 1
          %s386 = scalar_lea.sflag [#allocation5], %s385
          %s387 = sand.u32 %s55, 1
          %s388 = smul.addr %s387, 8
          %s389 = scalar_lea.vmem [#allocation4], %s388
          %s391 = ssub.s32 128, 128
          %392 = vsyncadd %s386, %s391
          %s393 = sadd.s32 %s39, %s38
          %s394 = smul.addr %s393, 128
          %s395 = scalar_lea.hbm %s0, %s394
          %s397 = sshll.u32 %s389, 4
          %s398 = int_to_ptr.vmem [resolvable:$true] %s397
          %400 = dma.hbm_to_vmem [thread:$0]  %s395, 128, %s398, %s386
        $region44: #{tpu_custom_call.1} parent=39 // pred_fallthru
          _
        // Predicated region
        $region45: #{tpu_custom_call.1} parent=39 // pred_check
          %p401 = pneg %p91
        $region46: #{tpu_custom_call.1} parent=39 // pred_check_branch
          %403 = sbr.rel (%p401) target = $region48
        $region47: #{tpu_custom_call.1} parent=39 // pred_region
          %s404 = sand.u32 %s31, 1
          %s405 = scalar_lea.sflag [#allocation8], %s404
          %s406 = sand.u32 %s81, 1
          %s407 = smul.addr %s406, 8
          %s408 = scalar_lea.vmem [#allocation7], %s407
          %s410 = ssub.s32 128, 128
          %411 = vsyncadd %s405, %s410
          %s412 = smul.addr %s38, 128
          %s413 = scalar_lea.hbm %s1, %s412
          %s415 = sshll.u32 %s408, 4
          %s416 = int_to_ptr.vmem [resolvable:$true] %s415
          %418 = dma.hbm_to_vmem [thread:$0]  %s413, 128, %s416, %s405
        $region48: #{tpu_custom_call.1} parent=39 // pred_fallthru
          _
        // Predicated region
        $region49: #{tpu_custom_call.1} parent=39 // pred_check
          %p419 = pneg %p117
        $region50: #{tpu_custom_call.1} parent=39 // pred_check_branch
          %421 = sbr.rel (%p419) target = $region52
        $region51: #{tpu_custom_call.1} parent=39 // pred_region
          %s422 = sand.u32 %s31, 1
          %s423 = scalar_lea.sflag [#allocation8], %s422
          %s424 = sand.u32 %s107, 1
          %s425 = smul.addr %s424, 8
          %s426 = scalar_lea.vmem [#allocation9], %s425
          %s428 = ssub.s32 128, 128
          %429 = vsyncadd %s423, %s428
          %s430 = smul.addr %s38, 128
          %s431 = scalar_lea.hbm %s2, %s430
          %s433 = sshll.u32 %s426, 4
          %s434 = int_to_ptr.vmem [resolvable:$true] %s433
          %436 = dma.hbm_to_vmem [thread:$0]  %s431, 128, %s434, %s423
        $region52: #{tpu_custom_call.1} parent=39 // pred_fallthru
          _
      $region40: #{tpu_custom_call.1} parent=5 // pred_fallthru
        _
      %p437 = scmp.le.s32.totalorder 1, %s31
      %p438 = scmp.lt.s32.totalorder %s31, 3
      %p439 = pnand %p437, %p438
      %p440 = pneg %p439
      // Predicated region
      $region53: #{tpu_custom_call.1} parent=5 // pred_check
        _
      $region54: #{tpu_custom_call.1} parent=5 // pred_check_branch
        %442 = sbr.rel (%p439) target = $region56
      $region55: #{tpu_custom_call.1} parent=5 // pred_region
        %s443 = ssub.s32 %s31, 1
        %s444 = sand.u32 %s58, 1
        %s445 = scalar_lea.sflag [#allocation5], %s444
        %s446 = sand.u32 %s58, 1
        %s447 = smul.addr %s446, 8
        %s448 = scalar_lea.vmem [#allocation4], %s447
        // Predicated region
        $region57: #{tpu_custom_call.1} parent=55 // pred_check
          %p449 = pneg %p71
        $region58: #{tpu_custom_call.1} parent=55 // pred_check_branch
          %451 = sbr.rel (%p449) target = $region60
        $region59: #{tpu_custom_call.1} parent=55 // pred_region
          %452 = dma.done %s445, 128
        $region60: #{tpu_custom_call.1} parent=55 // pred_fallthru
          _
        %s453 = sand.u32 %s36, 1
        %s454 = scalar_lea.sflag [#allocation8], %s453
        %s455 = sand.u32 %s84, 1
        %s456 = smul.addr %s455, 8
        %s457 = scalar_lea.vmem [#allocation7], %s456
        // Predicated region
        $region61: #{tpu_custom_call.1} parent=55 // pred_check
          %p458 = pneg %p97
        $region62: #{tpu_custom_call.1} parent=55 // pred_check_branch
          %460 = sbr.rel (%p458) target = $region64
        $region63: #{tpu_custom_call.1} parent=55 // pred_region
          %461 = dma.done %s454, 128
        $region64: #{tpu_custom_call.1} parent=55 // pred_fallthru
          _
        %s462 = sand.u32 %s36, 1
        %s463 = scalar_lea.sflag [#allocation8], %s462
        %s464 = sand.u32 %s110, 1
        %s465 = smul.addr %s464, 8
        %s466 = scalar_lea.vmem [#allocation9], %s465
        // Predicated region
        $region65: #{tpu_custom_call.1} parent=55 // pred_check
          %p467 = pneg %p123
        $region66: #{tpu_custom_call.1} parent=55 // pred_check_branch
          %469 = sbr.rel (%p467) target = $region68
        $region67: #{tpu_custom_call.1} parent=55 // pred_region
          %470 = dma.done %s463, 128
        $region68: #{tpu_custom_call.1} parent=55 // pred_fallthru
          _
        // Predicated region
        $region69: #{tpu_custom_call.1} parent=55 // pred_check
          %p471 = pneg %p144
        $region70: #{tpu_custom_call.1} parent=55 // pred_check_branch
          %473 = sbr.rel (%p471) target = $region72
        $region71: #{tpu_custom_call.1} parent=55 // pred_region
          %474 = dma.done [#allocation11], 512
        $region72: #{tpu_custom_call.1} parent=55 // pred_fallthru
          _
        // Predicated region
        $region73: #{tpu_custom_call.1} parent=55 // pred_check
          %p475 = pneg %p165
        $region74: #{tpu_custom_call.1} parent=55 // pred_check_branch
          %477 = sbr.rel (%p475) target = $region76
        $region75: #{tpu_custom_call.1} parent=55 // pred_region
          %478 = dma.done [#allocation11], 512
        $region76: #{tpu_custom_call.1} parent=55 // pred_fallthru
          _
        // Predicated region
        $region77: #{tpu_custom_call.1} parent=55 // pred_check
          %p479 = pneg %p186
        $region78: #{tpu_custom_call.1} parent=55 // pred_check_branch
          %481 = sbr.rel (%p479) target = $region80
        $region79: #{tpu_custom_call.1} parent=55 // pred_region
          %482 = dma.done [#allocation14], 512
        $region80: #{tpu_custom_call.1} parent=55 // pred_fallthru
          _
        // Predicated region
        $region81: #{tpu_custom_call.1} parent=55 // pred_check
          %p483 = pneg %p207
        $region82: #{tpu_custom_call.1} parent=55 // pred_check_branch
          %485 = sbr.rel (%p483) target = $region84
        $region83: #{tpu_custom_call.1} parent=55 // pred_region
          %486 = dma.done [#allocation14], 512
        $region84: #{tpu_custom_call.1} parent=55 // pred_fallthru
          _
        %s487 = sand.u32 %s58, 1
        %s488 = scalar_lea.sflag [#allocation5], %s487
        %s489 = sand.u32 %s58, 1
        %s490 = smul.addr %s489, 8
        %s491 = scalar_lea.vmem [#allocation4], %s490
        %p492 = pneg %p71
        %p493 = pneg %p68
        %s494 = sand.u32 %s36, 1
        %s495 = scalar_lea.sflag [#allocation8], %s494
        %s496 = sand.u32 %s84, 1
        %s497 = smul.addr %s496, 8
        %s498 = scalar_lea.vmem [#allocation7], %s497
        %p499 = pneg %p97
        %p500 = pneg %p94
        %s501 = sand.u32 %s36, 1
        %s502 = scalar_lea.sflag [#allocation8], %s501
        %s503 = sand.u32 %s110, 1
        %s504 = smul.addr %s503, 8
        %s505 = scalar_lea.vmem [#allocation9], %s504
        %p506 = pneg %p123
        %p507 = pneg %p120
        %p508 = pneg %p144
        %p509 = pneg %p141
        %p510 = pneg %p165
        %p511 = pneg %p162
        %p512 = pneg %p186
        %p513 = pneg %p183
        %p514 = pneg %p207
        %p515 = pneg %p204
        %p516 = pneg %p228
        %p517 = pneg %p225
        %p518 = pneg %p249
        %p519 = pneg %p246
        %p520 = pneg %p277
        %p521 = pneg %p274
        %s522 = sand.u32 %s264, 1
        %s523 = scalar_lea.sflag [#allocation6], %s522
        %s524 = sand.u32 %s264, 1
        %s525 = smul.addr %s524, 8
        %s526 = scalar_lea.vmem [#allocation16], %s525
        %p527 = pneg %p305
        %p528 = pneg %p302
        %s529 = sand.u32 %s292, 1
        %s530 = scalar_lea.sflag [#allocation18], %s529
        %s531 = sand.u32 %s292, 1
        %s532 = smul.addr %s531, 32
        %s533 = scalar_lea.vmem [#allocation17], %s532
        %p534 = scmp.eq.s32.totalorder %s41, 0
        // Predicated region
        $region85: #{tpu_custom_call.1} parent=55 // pred_check
          %p535 = pneg %p534
        $region86: #{tpu_custom_call.1} parent=55 // pred_check_branch
          %537 = sbr.rel (%p535) target = $region88
        $region87: #{tpu_custom_call.1} parent=55 // pred_region
          %v538 = vld [vmem:[%s457] sm:$0xff]
          %v539 = vld [vmem:[%s466] sm:$0xff]
          %v540 = vld [vmem:[#allocation12] sm:$0xff]
          %v541 = vld [vmem:[#allocation12 + $0x8] sm:$0xff]
          %v542 = vld [vmem:[#allocation12 + $0x10] sm:$0xff]
          %v543 = vld [vmem:[#allocation12 + $0x18] sm:$0xff]
          %vm544 = vcmask 261120
          %v546 = vsel %vm544, %v538, 0
          %548 = vmatprep.subr.mxu0 0.0
          %549 = vmatpush1.msra.mxu0 %v540
          %550 = vmatprep.subr.mxu0 0.0
          %551 = vmatpush1.msra.mxu0 %v541
          %552 = vmatprep.subr.mxu0 0.0
          %553 = vmatpush1.msra.mxu0 %v542
          %554 = vmatprep.subr.mxu0 0.0
          %555 = vmatpush1.msra.mxu0 %v543
          %556 = vmatprep.subr.mxu0 0.0
          %557 = vmatpush1.msra.mxu0 0.0
          %558 = vmatprep.subr.mxu0 0.0
          %559 = vmatpush1.msra.mxu0 0.0
          %560 = vmatprep.subr.mxu0 0.0
          %561 = vmatpush1.msra.mxu0 0.0
          %562 = vmatprep.subr.mxu0 0.0
          %563 = vmatpush1.msra.mxu0 0.0
          %564 = vmatprep.subr.mxu0 0.0
          %565 = vmatpush1.msra.mxu0 0.0
          %566 = vmatprep.subr.mxu0 0.0
          %567 = vmatpush1.msra.mxu0 0.0
          %568 = vmatprep.subr.mxu0 0.0
          %569 = vmatpush1.msra.mxu0 0.0
          %570 = vmatprep.subr.mxu0 0.0
          %571 = vmatpush1.msra.mxu0 0.0
          %572 = vmatprep.subr.mxu0 0.0
          %573 = vmatpush1.msra.mxu0 0.0
          %574 = vmatprep.subr.mxu0 0.0
          %575 = vmatpush1.msra.mxu0 0.0
          %576 = vmatprep.subr.mxu0 0.0
          %577 = vmatpush1.msra.mxu0 0.0
          %578 = vmatprep.subr.mxu0 0.0
          %579 = vmatpush1.msra.mxu0 0.0
          %580 = vmatprep.subr.mxu0 0.0
          %581 = vmatpush1.msra.mxu0 0.0
          %582 = vmatprep.subr.mxu0 0.0
          %583 = vmatpush1.msra.mxu0 0.0
          %584 = vmatprep.subr.mxu0 0.0
          %585 = vmatpush1.msra.mxu0 0.0
          %586 = vmatprep.subr.mxu0 0.0
          %587 = vmatpush1.msra.mxu0 0.0
          %588 = vmatprep.subr.mxu0 0.0
          %589 = vmatpush1.msra.mxu0 0.0
          %590 = vmatprep.subr.mxu0 0.0
          %591 = vmatpush1.msra.mxu0 0.0
          %592 = vmatprep.subr.mxu0 0.0
          %593 = vmatpush1.msra.mxu0 0.0
          %594 = vmatprep.subr.mxu0 0.0
          %595 = vmatpush1.msra.mxu0 0.0
          %596 = vmatprep.subr.mxu0 0.0
          %597 = vmatpush1.msra.mxu0 0.0
          %598 = vmatprep.subr.mxu0 0.0
          %599 = vmatpush1.msra.mxu0 0.0
          %600 = vmatprep.subr.mxu0 0.0
          %601 = vmatpush1.msra.mxu0 0.0
          %602 = vmatprep.subr.mxu0 0.0
          %603 = vmatpush1.msra.mxu0 0.0
          %604 = vmatprep.subr.mxu0 0.0
          %605 = vmatpush1.msra.mxu0 0.0
          %606 = vmatprep.subr.mxu0 0.0
          %607 = vmatpush1.msra.mxu0 0.0
          %608 = vmatprep.subr.mxu0 0.0
          %609 = vmatpush1.msra.mxu0 0.0
          %610 = vmatprep.subr.mxu0 0.0
          %611 = vmatpush1.msra.mxu0 0.0
          %612 = vmatprep.mubr.f32.mxu0 0.0
          %613 = vmatmul.mubr.f32.gmra.mrb[0].mxu0 %v546
          %v614 = vpop.f32.mrb[0].mxu0
          %v615 = vadd.f32 0.0, %v614
          %v616 = vpop.f32.mrb[0].mxu0
          %617 = vdwg.mxu0
          %v618 = vld [vmem:[#allocation13] sm:$0xff]
          %v619 = vld [vmem:[#allocation13 + $0x8] sm:$0xff]
          %v620 = vld [vmem:[#allocation13 + $0x10] sm:$0xff]
          %v621 = vld [vmem:[#allocation13 + $0x18] sm:$0xff]
          %v623 = vsel %vm544, %v539, 0
          %625 = vmatprep.subr.mxu0 0.0
          %626 = vmatpush1.msra.mxu0 %v618
          %627 = vmatprep.subr.mxu0 0.0
          %628 = vmatpush1.msra.mxu0 %v619
          %629 = vmatprep.subr.mxu0 0.0
          %630 = vmatpush1.msra.mxu0 %v620
          %631 = vmatprep.subr.mxu0 0.0
          %632 = vmatpush1.msra.mxu0 %v621
          %633 = vmatprep.subr.mxu0 0.0
          %634 = vmatpush1.msra.mxu0 0.0
          %635 = vmatprep.subr.mxu0 0.0
          %636 = vmatpush1.msra.mxu0 0.0
          %637 = vmatprep.subr.mxu0 0.0
          %638 = vmatpush1.msra.mxu0 0.0
          %639 = vmatprep.subr.mxu0 0.0
          %640 = vmatpush1.msra.mxu0 0.0
          %641 = vmatprep.subr.mxu0 0.0
          %642 = vmatpush1.msra.mxu0 0.0
          %643 = vmatprep.subr.mxu0 0.0
          %644 = vmatpush1.msra.mxu0 0.0
          %645 = vmatprep.subr.mxu0 0.0
          %646 = vmatpush1.msra.mxu0 0.0
          %647 = vmatprep.subr.mxu0 0.0
          %648 = vmatpush1.msra.mxu0 0.0
          %649 = vmatprep.subr.mxu0 0.0
          %650 = vmatpush1.msra.mxu0 0.0
          %651 = vmatprep.subr.mxu0 0.0
          %652 = vmatpush1.msra.mxu0 0.0
          %653 = vmatprep.subr.mxu0 0.0
          %654 = vmatpush1.msra.mxu0 0.0
          %655 = vmatprep.subr.mxu0 0.0
          %656 = vmatpush1.msra.mxu0 0.0
          %657 = vmatprep.subr.mxu0 0.0
          %658 = vmatpush1.msra.mxu0 0.0
          %659 = vmatprep.subr.mxu0 0.0
          %660 = vmatpush1.msra.mxu0 0.0
          %661 = vmatprep.subr.mxu0 0.0
          %662 = vmatpush1.msra.mxu0 0.0
          %663 = vmatprep.subr.mxu0 0.0
          %664 = vmatpush1.msra.mxu0 0.0
          %665 = vmatprep.subr.mxu0 0.0
          %666 = vmatpush1.msra.mxu0 0.0
          %667 = vmatprep.subr.mxu0 0.0
          %668 = vmatpush1.msra.mxu0 0.0
          %669 = vmatprep.subr.mxu0 0.0
          %670 = vmatpush1.msra.mxu0 0.0
          %671 = vmatprep.subr.mxu0 0.0
          %672 = vmatpush1.msra.mxu0 0.0
          %673 = vmatprep.subr.mxu0 0.0
          %674 = vmatpush1.msra.mxu0 0.0
          %675 = vmatprep.subr.mxu0 0.0
          %676 = vmatpush1.msra.mxu0 0.0
          %677 = vmatprep.subr.mxu0 0.0
          %678 = vmatpush1.msra.mxu0 0.0
          %679 = vmatprep.subr.mxu0 0.0
          %680 = vmatpush1.msra.mxu0 0.0
          %681 = vmatprep.subr.mxu0 0.0
          %682 = vmatpush1.msra.mxu0 0.0
          %683 = vmatprep.subr.mxu0 0.0
          %684 = vmatpush1.msra.mxu0 0.0
          %685 = vmatprep.subr.mxu0 0.0
          %686 = vmatpush1.msra.mxu0 0.0
          %687 = vmatprep.subr.mxu0 0.0
          %688 = vmatpush1.msra.mxu0 0.0
          %689 = vmatprep.mubr.f32.mxu0 0.0
          %690 = vmatmul.mubr.f32.gmra.mrb[0].mxu0 %v623
          %v691 = vpop.f32.mrb[0].mxu0
          %v692 = vadd.f32 0.0, %v691
          %v693 = vpop.f32.mrb[0].mxu0
          %694 = vdwg.mxu0
          %696 = vrot.lane.b32.xlu0 %v615, 120
          %v697 = vpop.permute.xlu0 %696
          %699 = vrot.lane.b32.xlu0 %v615, 112
          %v700 = vpop.permute.xlu0 %699
          %702 = vrot.lane.b32.xlu0 %v615, 104
          %v703 = vpop.permute.xlu0 %702
          %v705 = vcombine.low %v615, %v700
          %v706 = vcombine.high %v615, %v700
          %v708 = vunpack.c.l.s4 1983009808
          %v709 = vunpack.c.0.s8 %v708
          %v710 = vlaneseq
          %v711 = vshrl.u32 %v710, 7
          %v712 = vsub.s32 %v709, %v711
          %v713 = vrot.slane %v705, %v712
          %v715 = vunpack.c.l.s4 1983009808
          %v716 = vunpack.c.0.s8 %v715
          %v717 = vlaneseq
          %v718 = vshrl.u32 %v717, 7
          %v719 = vsub.s32 %v716, %v718
          %v720 = vrot.slane %v706, %v719
          %v721 = vcombine.low %v697, %v703
          %v722 = vcombine.high %v697, %v703
          %v724 = vunpack.c.l.s4 1983009808
          %v725 = vunpack.c.0.s8 %v724
          %v726 = vlaneseq
          %v727 = vshrl.u32 %v726, 7
          %v728 = vsub.s32 %v725, %v727
          %v729 = vrot.slane %v721, %v728
          %v731 = vunpack.c.l.s4 1983009808
          %v732 = vunpack.c.0.s8 %v731
          %v733 = vlaneseq
          %v734 = vshrl.u32 %v733, 7
          %v735 = vsub.s32 %v732, %v734
          %v736 = vrot.slane %v722, %v735
          %v737 = vcombine.low %v713, %v729
          %v738 = vcombine.high %v713, %v729
          %v740 = vunpack.c.l.s4 1934713408
          %v741 = vunpack.c.0.s8 %v740
          %v742 = vlaneseq
          %v743 = vshrl.u32 %v742, 7
          %v744 = vsub.s32 %v741, %v743
          %v745 = vrot.slane %v737, %v744
          %v747 = vunpack.c.l.s4 1934713408
          %v748 = vunpack.c.0.s8 %v747
          %v749 = vlaneseq
          %v750 = vshrl.u32 %v749, 7
          %v751 = vsub.s32 %v748, %v750
          %v752 = vrot.slane %v738, %v751
          %v753 = vcombine.low %v720, %v736
          %v754 = vcombine.high %v720, %v736
          %v756 = vunpack.c.l.s4 1934713408
          %v757 = vunpack.c.0.s8 %v756
          %v758 = vlaneseq
          %v759 = vshrl.u32 %v758, 7
          %v760 = vsub.s32 %v757, %v759
          %v761 = vrot.slane %v753, %v760
          %v763 = vunpack.c.l.s4 1934713408
          %v764 = vunpack.c.0.s8 %v763
          %v765 = vlaneseq
          %v766 = vshrl.u32 %v765, 7
          %v767 = vsub.s32 %v764, %v766
          %v768 = vrot.slane %v754, %v767
          %v769 = vcombine.high %v745, 0.0
          %v770 = vcombine.high %v752, 0.0
          %v771 = vcombine.high %v761, 0.0
          %v772 = vcombine.high %v768, 0.0
          %v773 = vcombine.low %v745, %v752
          %v775 = vunpack.c.l.s4 1983009808
          %v776 = vunpack.c.0.s8 %v775
          %v777 = vlaneseq
          %v778 = vshrl.u32 %v777, 7
          %v779 = vsub.s32 %v776, %v778
          %v780 = vrot.slane %v773, %v779
          %v781 = vcombine.low %v769, %v770
          %v783 = vunpack.c.l.s4 1983009808
          %v784 = vunpack.c.0.s8 %v783
          %v785 = vlaneseq
          %v786 = vshrl.u32 %v785, 7
          %v787 = vsub.s32 %v784, %v786
          %v788 = vrot.slane %v781, %v787
          %v789 = vcombine.low %v761, %v768
          %v791 = vunpack.c.l.s4 1983009808
          %v792 = vunpack.c.0.s8 %v791
          %v793 = vlaneseq
          %v794 = vshrl.u32 %v793, 7
          %v795 = vsub.s32 %v792, %v794
          %v796 = vrot.slane %v789, %v795
          %v797 = vcombine.low %v771, %v772
          %v799 = vunpack.c.l.s4 1983009808
          %v800 = vunpack.c.0.s8 %v799
          %v801 = vlaneseq
          %v802 = vshrl.u32 %v801, 7
          %v803 = vsub.s32 %v800, %v802
          %v804 = vrot.slane %v797, %v803
          %v805 = vcombine.low %v780, %v788
          %v806 = vcombine.high %v780, %v788
          %v808 = vunpack.c.l.s4 1934713408
          %v809 = vunpack.c.0.s8 %v808
          %v810 = vlaneseq
          %v811 = vshrl.u32 %v810, 7
          %v812 = vsub.s32 %v809, %v811
          %v813 = vrot.slane %v805, %v812
          %v815 = vunpack.c.l.s4 1934713408
          %v816 = vunpack.c.0.s8 %v815
          %v817 = vlaneseq
          %v818 = vshrl.u32 %v817, 7
          %v819 = vsub.s32 %v816, %v818
          %v820 = vrot.slane %v806, %v819
          %v821 = vcombine.low %v796, %v804
          %v822 = vcombine.high %v796, %v804
          %v824 = vunpack.c.l.s4 1934713408
          %v825 = vunpack.c.0.s8 %v824
          %v826 = vlaneseq
          %v827 = vshrl.u32 %v826, 7
          %v828 = vsub.s32 %v825, %v827
          %v829 = vrot.slane %v821, %v828
          %v831 = vunpack.c.l.s4 1934713408
          %v832 = vunpack.c.0.s8 %v831
          %v833 = vlaneseq
          %v834 = vshrl.u32 %v833, 7
          %v835 = vsub.s32 %v832, %v834
          %v836 = vrot.slane %v822, %v835
          %v837 = vcombine.low %v813, %v829
          %v838 = vcombine.high %v813, %v829
          %v839 = vcombine.low %v820, %v836
          %v840 = vcombine.high %v820, %v836
          %vm841 = vcmask 64512
          %842 = vst.msk [vmem:[#allocation2] sm:$0xff] %vm841, %v837
          %843 = vst.msk [vmem:[#allocation2 + $0x8] sm:$0xff] %vm841, %v838
          %844 = vst.msk [vmem:[#allocation2 + $0x10] sm:$0xff] %vm841, %v839
          %845 = vst.msk [vmem:[#allocation2 + $0x18] sm:$0xff] %vm841, %v840
          %847 = vrot.lane.b32.xlu0 %v692, 120
          %v848 = vpop.permute.xlu0 %847
          %850 = vrot.lane.b32.xlu0 %v692, 112
          %v851 = vpop.permute.xlu0 %850
          %853 = vrot.lane.b32.xlu0 %v692, 104
          %v854 = vpop.permute.xlu0 %853
          %v856 = vcombine.low %v692, %v851
          %v857 = vcombine.high %v692, %v851
          %v859 = vunpack.c.l.s4 1983009808
          %v860 = vunpack.c.0.s8 %v859
          %v861 = vlaneseq
          %v862 = vshrl.u32 %v861, 7
          %v863 = vsub.s32 %v860, %v862
          %v864 = vrot.slane %v856, %v863
          %v866 = vunpack.c.l.s4 1983009808
          %v867 = vunpack.c.0.s8 %v866
          %v868 = vlaneseq
          %v869 = vshrl.u32 %v868, 7
          %v870 = vsub.s32 %v867, %v869
          %v871 = vrot.slane %v857, %v870
          %v872 = vcombine.low %v848, %v854
          %v873 = vcombine.high %v848, %v854
          %v875 = vunpack.c.l.s4 1983009808
          %v876 = vunpack.c.0.s8 %v875
          %v877 = vlaneseq
          %v878 = vshrl.u32 %v877, 7
          %v879 = vsub.s32 %v876, %v878
          %v880 = vrot.slane %v872, %v879
          %v882 = vunpack.c.l.s4 1983009808
          %v883 = vunpack.c.0.s8 %v882
          %v884 = vlaneseq
          %v885 = vshrl.u32 %v884, 7
          %v886 = vsub.s32 %v883, %v885
          %v887 = vrot.slane %v873, %v886
          %v888 = vcombine.low %v864, %v880
          %v889 = vcombine.high %v864, %v880
          %v891 = vunpack.c.l.s4 1934713408
          %v892 = vunpack.c.0.s8 %v891
          %v893 = vlaneseq
          %v894 = vshrl.u32 %v893, 7
          %v895 = vsub.s32 %v892, %v894
          %v896 = vrot.slane %v888, %v895
          %v898 = vunpack.c.l.s4 1934713408
          %v899 = vunpack.c.0.s8 %v898
          %v900 = vlaneseq
          %v901 = vshrl.u32 %v900, 7
          %v902 = vsub.s32 %v899, %v901
          %v903 = vrot.slane %v889, %v902
          %v904 = vcombine.low %v871, %v887
          %v905 = vcombine.high %v871, %v887
          %v907 = vunpack.c.l.s4 1934713408
          %v908 = vunpack.c.0.s8 %v907
          %v909 = vlaneseq
          %v910 = vshrl.u32 %v909, 7
          %v911 = vsub.s32 %v908, %v910
          %v912 = vrot.slane %v904, %v911
          %v914 = vunpack.c.l.s4 1934713408
          %v915 = vunpack.c.0.s8 %v914
          %v916 = vlaneseq
          %v917 = vshrl.u32 %v916, 7
          %v918 = vsub.s32 %v915, %v917
          %v919 = vrot.slane %v905, %v918
          %v920 = vcombine.high %v896, 0.0
          %v921 = vcombine.high %v903, 0.0
          %v922 = vcombine.high %v912, 0.0
          %v923 = vcombine.high %v919, 0.0
          %v924 = vcombine.low %v896, %v903
          %v926 = vunpack.c.l.s4 1983009808
          %v927 = vunpack.c.0.s8 %v926
          %v928 = vlaneseq
          %v929 = vshrl.u32 %v928, 7
          %v930 = vsub.s32 %v927, %v929
          %v931 = vrot.slane %v924, %v930
          %v932 = vcombine.low %v920, %v921
          %v934 = vunpack.c.l.s4 1983009808
          %v935 = vunpack.c.0.s8 %v934
          %v936 = vlaneseq
          %v937 = vshrl.u32 %v936, 7
          %v938 = vsub.s32 %v935, %v937
          %v939 = vrot.slane %v932, %v938
          %v940 = vcombine.low %v912, %v919
          %v942 = vunpack.c.l.s4 1983009808
          %v943 = vunpack.c.0.s8 %v942
          %v944 = vlaneseq
          %v945 = vshrl.u32 %v944, 7
          %v946 = vsub.s32 %v943, %v945
          %v947 = vrot.slane %v940, %v946
          %v948 = vcombine.low %v922, %v923
          %v950 = vunpack.c.l.s4 1983009808
          %v951 = vunpack.c.0.s8 %v950
          %v952 = vlaneseq
          %v953 = vshrl.u32 %v952, 7
          %v954 = vsub.s32 %v951, %v953
          %v955 = vrot.slane %v948, %v954
          %v956 = vcombine.low %v931, %v939
          %v957 = vcombine.high %v931, %v939
          %v959 = vunpack.c.l.s4 1934713408
          %v960 = vunpack.c.0.s8 %v959
          %v961 = vlaneseq
          %v962 = vshrl.u32 %v961, 7
          %v963 = vsub.s32 %v960, %v962
          %v964 = vrot.slane %v956, %v963
          %v966 = vunpack.c.l.s4 1934713408
          %v967 = vunpack.c.0.s8 %v966
          %v968 = vlaneseq
          %v969 = vshrl.u32 %v968, 7
          %v970 = vsub.s32 %v967, %v969
          %v971 = vrot.slane %v957, %v970
          %v972 = vcombine.low %v947, %v955
          %v973 = vcombine.high %v947, %v955
          %v975 = vunpack.c.l.s4 1934713408
          %v976 = vunpack.c.0.s8 %v975
          %v977 = vlaneseq
          %v978 = vshrl.u32 %v977, 7
          %v979 = vsub.s32 %v976, %v978
          %v980 = vrot.slane %v972, %v979
          %v982 = vunpack.c.l.s4 1934713408
          %v983 = vunpack.c.0.s8 %v982
          %v984 = vlaneseq
          %v985 = vshrl.u32 %v984, 7
          %v986 = vsub.s32 %v983, %v985
          %v987 = vrot.slane %v973, %v986
          %v988 = vcombine.low %v964, %v980
          %v989 = vcombine.high %v964, %v980
          %v990 = vcombine.low %v971, %v987
          %v991 = vcombine.high %v971, %v987
          %992 = vst.msk [vmem:[#allocation3] sm:$0xff] %vm841, %v988
          %993 = vst.msk [vmem:[#allocation3 + $0x8] sm:$0xff] %vm841, %v989
          %994 = vst.msk [vmem:[#allocation3 + $0x10] sm:$0xff] %vm841, %v990
          %995 = vst.msk [vmem:[#allocation3 + $0x18] sm:$0xff] %vm841, %v991
        $region88: #{tpu_custom_call.1} parent=55 // pred_fallthru
          _
        %v996 = vld [vmem:[%s448] sm:$0xff]
        %vm997 = vcmask 261120
        %v998 = vsel %vm997, %v996, 0.0
        %999 = vadd.xlane.f32.xlu0 %v998
        %v1000 = vpop.xlane.xlu0 %999
        %v1001 = vrcp.pop 32.0
        %v1002 = vmul.f32 %v1000, %v1001
        %v1003 = vsub.f32 %v996, %v1002
        %v1004 = vmul.f32 %v1003, %v1003
        %v1005 = vsel %vm997, %v1004, 0.0
        %1006 = vadd.xlane.f32.xlu0 %v1005
        %v1007 = vpop.xlane.xlu0 %1006
        %v1008 = vmul.f32 %v1007, %v1001
        %v1009 = vadd.f32 %v1008, 1e-06
        %v1010 = vrsqrt.pop %v1009
        %v1011 = vmul.f32 %v1003, %v1010
        %v1012 = vld [vmem:[%s7] sm:$0x1]
        %v1014 = vlaneseq
        %v1015 = vshrl.u32 %v1014, 7
        %v1016 = vsub.s32 0, %v1015
        %v1017 = vrot.slane %v1012, %v1016
        %v1019 = vmul.f32 %v1011, %v1017
        %v1020 = vld [vmem:[%s8] sm:$0x1]
        %v1022 = vlaneseq
        %v1023 = vshrl.u32 %v1022, 7
        %v1024 = vsub.s32 0, %v1023
        %v1025 = vrot.slane %v1020, %v1024
        %v1027 = vadd.f32 %v1019, %v1025
        %v1028 = vld [vmem:[#allocation10] sm:$0xff]
        %v1029 = vld [vmem:[#allocation10 + $0x8] sm:$0xff]
        %v1030 = vld [vmem:[#allocation10 + $0x10] sm:$0xff]
        %v1031 = vld [vmem:[#allocation10 + $0x18] sm:$0xff]
        %v1033 = vsel %vm997, %v1027, 0
        %1035 = vmatprep.subr.mxu0 0.0
        %1036 = vmatpush1.msra.mxu0 %v1028
        %1037 = vmatprep.subr.mxu0 0.0
        %1038 = vmatpush1.msra.mxu0 %v1029
        %1039 = vmatprep.subr.mxu0 0.0
        %1040 = vmatpush1.msra.mxu0 %v1030
        %1041 = vmatprep.subr.mxu0 0.0
        %1042 = vmatpush1.msra.mxu0 %v1031
        %1043 = vmatprep.subr.mxu0 0.0
        %1044 = vmatpush1.msra.mxu0 0.0
        %1045 = vmatprep.subr.mxu0 0.0
        %1046 = vmatpush1.msra.mxu0 0.0
        %1047 = vmatprep.subr.mxu0 0.0
        %1048 = vmatpush1.msra.mxu0 0.0
        %1049 = vmatprep.subr.mxu0 0.0
        %1050 = vmatpush1.msra.mxu0 0.0
        %1051 = vmatprep.subr.mxu0 0.0
        %1052 = vmatpush1.msra.mxu0 0.0
        %1053 = vmatprep.subr.mxu0 0.0
        %1054 = vmatpush1.msra.mxu0 0.0
        %1055 = vmatprep.subr.mxu0 0.0
        %1056 = vmatpush1.msra.mxu0 0.0
        %1057 = vmatprep.subr.mxu0 0.0
        %1058 = vmatpush1.msra.mxu0 0.0
        %1059 = vmatprep.subr.mxu0 0.0
        %1060 = vmatpush1.msra.mxu0 0.0
        %1061 = vmatprep.subr.mxu0 0.0
        %1062 = vmatpush1.msra.mxu0 0.0
        %1063 = vmatprep.subr.mxu0 0.0
        %1064 = vmatpush1.msra.mxu0 0.0
        %1065 = vmatprep.subr.mxu0 0.0
        %1066 = vmatpush1.msra.mxu0 0.0
        %1067 = vmatprep.subr.mxu0 0.0
        %1068 = vmatpush1.msra.mxu0 0.0
        %1069 = vmatprep.subr.mxu0 0.0
        %1070 = vmatpush1.msra.mxu0 0.0
        %1071 = vmatprep.subr.mxu0 0.0
        %1072 = vmatpush1.msra.mxu0 0.0
        %1073 = vmatprep.subr.mxu0 0.0
        %1074 = vmatpush1.msra.mxu0 0.0
        %1075 = vmatprep.subr.mxu0 0.0
        %1076 = vmatpush1.msra.mxu0 0.0
        %1077 = vmatprep.subr.mxu0 0.0
        %1078 = vmatpush1.msra.mxu0 0.0
        %1079 = vmatprep.subr.mxu0 0.0
        %1080 = vmatpush1.msra.mxu0 0.0
        %1081 = vmatprep.subr.mxu0 0.0
        %1082 = vmatpush1.msra.mxu0 0.0
        %1083 = vmatprep.subr.mxu0 0.0
        %1084 = vmatpush1.msra.mxu0 0.0
        %1085 = vmatprep.subr.mxu0 0.0
        %1086 = vmatpush1.msra.mxu0 0.0
        %1087 = vmatprep.subr.mxu0 0.0
        %1088 = vmatpush1.msra.mxu0 0.0
        %1089 = vmatprep.subr.mxu0 0.0
        %1090 = vmatpush1.msra.mxu0 0.0
        %1091 = vmatprep.subr.mxu0 0.0
        %1092 = vmatpush1.msra.mxu0 0.0
        %1093 = vmatprep.subr.mxu0 0.0
        %1094 = vmatpush1.msra.mxu0 0.0
        %1095 = vmatprep.subr.mxu0 0.0
        %1096 = vmatpush1.msra.mxu0 0.0
        %1097 = vmatprep.subr.mxu0 0.0
        %1098 = vmatpush1.msra.mxu0 0.0
        %1099 = vmatprep.mubr.f32.mxu0 0.0
        %1100 = vmatmul.mubr.f32.gmra.mrb[0].mxu0 %v1033
        %v1101 = vpop.f32.mrb[0].mxu0
        %v1102 = vadd.f32 0.0, %v1101
        %v1103 = vpop.f32.mrb[0].mxu0
        %1104 = vdwg.mxu0
        %1106 = vrot.lane.b32.xlu0 %v1102, 120
        %v1107 = vpop.permute.xlu0 %1106
        %1109 = vrot.lane.b32.xlu0 %v1102, 112
        %v1110 = vpop.permute.xlu0 %1109
        %1112 = vrot.lane.b32.xlu0 %v1102, 104
        %v1113 = vpop.permute.xlu0 %1112
        %v1115 = vcombine.low %v1102, %v1110
        %v1116 = vcombine.high %v1102, %v1110
        %v1118 = vunpack.c.l.s4 1983009808
        %v1119 = vunpack.c.0.s8 %v1118
        %v1120 = vlaneseq
        %v1121 = vshrl.u32 %v1120, 7
        %v1122 = vsub.s32 %v1119, %v1121
        %v1123 = vrot.slane %v1115, %v1122
        %v1125 = vunpack.c.l.s4 1983009808
        %v1126 = vunpack.c.0.s8 %v1125
        %v1127 = vlaneseq
        %v1128 = vshrl.u32 %v1127, 7
        %v1129 = vsub.s32 %v1126, %v1128
        %v1130 = vrot.slane %v1116, %v1129
        %v1131 = vcombine.low %v1107, %v1113
        %v1132 = vcombine.high %v1107, %v1113
        %v1134 = vunpack.c.l.s4 1983009808
        %v1135 = vunpack.c.0.s8 %v1134
        %v1136 = vlaneseq
        %v1137 = vshrl.u32 %v1136, 7
        %v1138 = vsub.s32 %v1135, %v1137
        %v1139 = vrot.slane %v1131, %v1138
        %v1141 = vunpack.c.l.s4 1983009808
        %v1142 = vunpack.c.0.s8 %v1141
        %v1143 = vlaneseq
        %v1144 = vshrl.u32 %v1143, 7
        %v1145 = vsub.s32 %v1142, %v1144
        %v1146 = vrot.slane %v1132, %v1145
        %v1147 = vcombine.low %v1123, %v1139
        %v1148 = vcombine.high %v1123, %v1139
        %v1150 = vunpack.c.l.s4 1934713408
        %v1151 = vunpack.c.0.s8 %v1150
        %v1152 = vlaneseq
        %v1153 = vshrl.u32 %v1152, 7
        %v1154 = vsub.s32 %v1151, %v1153
        %v1155 = vrot.slane %v1147, %v1154
        %v1157 = vunpack.c.l.s4 1934713408
        %v1158 = vunpack.c.0.s8 %v1157
        %v1159 = vlaneseq
        %v1160 = vshrl.u32 %v1159, 7
        %v1161 = vsub.s32 %v1158, %v1160
        %v1162 = vrot.slane %v1148, %v1161
        %v1163 = vcombine.low %v1130, %v1146
        %v1164 = vcombine.high %v1130, %v1146
        %v1166 = vunpack.c.l.s4 1934713408
        %v1167 = vunpack.c.0.s8 %v1166
        %v1168 = vlaneseq
        %v1169 = vshrl.u32 %v1168, 7
        %v1170 = vsub.s32 %v1167, %v1169
        %v1171 = vrot.slane %v1163, %v1170
        %v1173 = vunpack.c.l.s4 1934713408
        %v1174 = vunpack.c.0.s8 %v1173
        %v1175 = vlaneseq
        %v1176 = vshrl.u32 %v1175, 7
        %v1177 = vsub.s32 %v1174, %v1176
        %v1178 = vrot.slane %v1164, %v1177
        %v1179 = vcombine.high %v1155, 0.0
        %v1180 = vcombine.high %v1162, 0.0
        %v1181 = vcombine.high %v1171, 0.0
        %v1182 = vcombine.high %v1178, 0.0
        %v1183 = vcombine.low %v1155, %v1162
        %v1185 = vunpack.c.l.s4 1983009808
        %v1186 = vunpack.c.0.s8 %v1185
        %v1187 = vlaneseq
        %v1188 = vshrl.u32 %v1187, 7
        %v1189 = vsub.s32 %v1186, %v1188
        %v1190 = vrot.slane %v1183, %v1189
        %v1191 = vcombine.low %v1179, %v1180
        %v1193 = vunpack.c.l.s4 1983009808
        %v1194 = vunpack.c.0.s8 %v1193
        %v1195 = vlaneseq
        %v1196 = vshrl.u32 %v1195, 7
        %v1197 = vsub.s32 %v1194, %v1196
        %v1198 = vrot.slane %v1191, %v1197
        %v1199 = vcombine.low %v1171, %v1178
        %v1201 = vunpack.c.l.s4 1983009808
        %v1202 = vunpack.c.0.s8 %v1201
        %v1203 = vlaneseq
        %v1204 = vshrl.u32 %v1203, 7
        %v1205 = vsub.s32 %v1202, %v1204
        %v1206 = vrot.slane %v1199, %v1205
        %v1207 = vcombine.low %v1181, %v1182
        %v1209 = vunpack.c.l.s4 1983009808
        %v1210 = vunpack.c.0.s8 %v1209
        %v1211 = vlaneseq
        %v1212 = vshrl.u32 %v1211, 7
        %v1213 = vsub.s32 %v1210, %v1212
        %v1214 = vrot.slane %v1207, %v1213
        %v1215 = vcombine.low %v1190, %v1198
        %v1216 = vcombine.high %v1190, %v1198
        %v1218 = vunpack.c.l.s4 1934713408
        %v1219 = vunpack.c.0.s8 %v1218
        %v1220 = vlaneseq
        %v1221 = vshrl.u32 %v1220, 7
        %v1222 = vsub.s32 %v1219, %v1221
        %v1223 = vrot.slane %v1215, %v1222
        %v1225 = vunpack.c.l.s4 1934713408
        %v1226 = vunpack.c.0.s8 %v1225
        %v1227 = vlaneseq
        %v1228 = vshrl.u32 %v1227, 7
        %v1229 = vsub.s32 %v1226, %v1228
        %v1230 = vrot.slane %v1216, %v1229
        %v1231 = vcombine.low %v1206, %v1214
        %v1232 = vcombine.high %v1206, %v1214
        %v1234 = vunpack.c.l.s4 1934713408
        %v1235 = vunpack.c.0.s8 %v1234
        %v1236 = vlaneseq
        %v1237 = vshrl.u32 %v1236, 7
        %v1238 = vsub.s32 %v1235, %v1237
        %v1239 = vrot.slane %v1231, %v1238
        %v1241 = vunpack.c.l.s4 1934713408
        %v1242 = vunpack.c.0.s8 %v1241
        %v1243 = vlaneseq
        %v1244 = vshrl.u32 %v1243, 7
        %v1245 = vsub.s32 %v1242, %v1244
        %v1246 = vrot.slane %v1232, %v1245
        %v1247 = vcombine.low %v1223, %v1239
        %v1248 = vcombine.high %v1223, %v1239
        %v1249 = vcombine.low %v1230, %v1246
        %v1250 = vcombine.high %v1230, %v1246
        %v1251 = vld [vmem:[#allocation2] sm:$0xff]
        %v1252 = vld [vmem:[#allocation2 + $0x8] sm:$0xff]
        %v1253 = vld [vmem:[#allocation2 + $0x10] sm:$0xff]
        %v1254 = vld [vmem:[#allocation2 + $0x18] sm:$0xff]
        %vm1255 = vcmask 64512
        %v1257 = vsel %vm1255, %v1247, 0
        %v1260 = vsel %vm1255, %v1251, 0
        %1262 = vmatprep.subr.mxu0 0.0
        %1263 = vmatpush1.xpose.msra.mxu0 %v1260
        %1264 = vmatprep.subr.mxu0 0.0
        %1265 = vmatpush1.xpose.msra.mxu0 0.0
        %1266 = vmatprep.subr.mxu0 0.0
        %1267 = vmatpush1.xpose.msra.mxu0 0.0
        %1268 = vmatprep.subr.mxu0 0.0
        %1269 = vmatpush1.xpose.msra.mxu0 0.0
        %1270 = vmatprep.subr.mxu0 0.0
        %1271 = vmatpush1.xpose.msra.mxu0 0.0
        %1272 = vmatprep.subr.mxu0 0.0
        %1273 = vmatpush1.xpose.msra.mxu0 0.0
        %1274 = vmatprep.subr.mxu0 0.0
        %1275 = vmatpush1.xpose.msra.mxu0 0.0
        %1276 = vmatprep.subr.mxu0 0.0
        %1277 = vmatpush1.xpose.msra.mxu0 0.0
        %1278 = vmatprep.subr.mxu0 0.0
        %1279 = vmatpush1.xpose.msra.mxu0 0.0
        %1280 = vmatprep.subr.mxu0 0.0
        %1281 = vmatpush1.xpose.msra.mxu0 0.0
        %1282 = vmatprep.subr.mxu0 0.0
        %1283 = vmatpush1.xpose.msra.mxu0 0.0
        %1284 = vmatprep.subr.mxu0 0.0
        %1285 = vmatpush1.xpose.msra.mxu0 0.0
        %1286 = vmatprep.subr.mxu0 0.0
        %1287 = vmatpush1.xpose.msra.mxu0 0.0
        %1288 = vmatprep.subr.mxu0 0.0
        %1289 = vmatpush1.xpose.msra.mxu0 0.0
        %1290 = vmatprep.subr.mxu0 0.0
        %1291 = vmatpush1.xpose.msra.mxu0 0.0
        %1292 = vmatprep.subr.mxu0 0.0
        %1293 = vmatpush1.xpose.msra.mxu0 0.0
        %1294 = vmatprep.subr.mxu0 0.0
        %1295 = vmatpush1.xpose.msra.mxu0 0.0
        %1296 = vmatprep.subr.mxu0 0.0
        %1297 = vmatpush1.xpose.msra.mxu0 0.0
        %1298 = vmatprep.subr.mxu0 0.0
        %1299 = vmatpush1.xpose.msra.mxu0 0.0
        %1300 = vmatprep.subr.mxu0 0.0
        %1301 = vmatpush1.xpose.msra.mxu0 0.0
        %1302 = vmatprep.subr.mxu0 0.0
        %1303 = vmatpush1.xpose.msra.mxu0 0.0
        %1304 = vmatprep.subr.mxu0 0.0
        %1305 = vmatpush1.xpose.msra.mxu0 0.0
        %1306 = vmatprep.subr.mxu0 0.0
        %1307 = vmatpush1.xpose.msra.mxu0 0.0
        %1308 = vmatprep.subr.mxu0 0.0
        %1309 = vmatpush1.xpose.msra.mxu0 0.0
        %1310 = vmatprep.subr.mxu0 0.0
        %1311 = vmatpush1.xpose.msra.mxu0 0.0
        %1312 = vmatprep.subr.mxu0 0.0
        %1313 = vmatpush1.xpose.msra.mxu0 0.0
        %1314 = vmatprep.subr.mxu0 0.0
        %1315 = vmatpush1.xpose.msra.mxu0 0.0
        %1316 = vmatprep.subr.mxu0 0.0
        %1317 = vmatpush1.xpose.msra.mxu0 0.0
        %1318 = vmatprep.subr.mxu0 0.0
        %1319 = vmatpush1.xpose.msra.mxu0 0.0
        %1320 = vmatprep.subr.mxu0 0.0
        %1321 = vmatpush1.xpose.msra.mxu0 0.0
        %1322 = vmatprep.subr.mxu0 0.0
        %1323 = vmatpush1.xpose.msra.mxu0 0.0
        %1324 = vmatprep.subr.mxu0 0.0
        %1325 = vmatpush1.xpose.msra.mxu0 0.0
        %1326 = vmatprep.mubr.f32.mxu0 0.0
        %1327 = vmatmul.mubr.f32.gmra.mrb[0].mxu0 %v1257
        %v1328 = vpop.f32.mrb[0].mxu0
        %v1329 = vadd.f32 0.0, %v1328
        %v1330 = vpop.f32.mrb[0].mxu0
        %1331 = vdwg.mxu0
        %v1333 = vsel %vm1255, %v1248, 0
        %v1336 = vsel %vm1255, %v1252, 0
        %1338 = vmatprep.subr.mxu0 0.0
        %1339 = vmatpush1.xpose.msra.mxu0 %v1336
        %1340 = vmatprep.subr.mxu0 0.0
        %1341 = vmatpush1.xpose.msra.mxu0 0.0
        %1342 = vmatprep.subr.mxu0 0.0
        %1343 = vmatpush1.xpose.msra.mxu0 0.0
        %1344 = vmatprep.subr.mxu0 0.0
        %1345 = vmatpush1.xpose.msra.mxu0 0.0
        %1346 = vmatprep.subr.mxu0 0.0
        %1347 = vmatpush1.xpose.msra.mxu0 0.0
        %1348 = vmatprep.subr.mxu0 0.0
        %1349 = vmatpush1.xpose.msra.mxu0 0.0
        %1350 = vmatprep.subr.mxu0 0.0
        %1351 = vmatpush1.xpose.msra.mxu0 0.0
        %1352 = vmatprep.subr.mxu0 0.0
        %1353 = vmatpush1.xpose.msra.mxu0 0.0
        %1354 = vmatprep.subr.mxu0 0.0
        %1355 = vmatpush1.xpose.msra.mxu0 0.0
        %1356 = vmatprep.subr.mxu0 0.0
        %1357 = vmatpush1.xpose.msra.mxu0 0.0
        %1358 = vmatprep.subr.mxu0 0.0
        %1359 = vmatpush1.xpose.msra.mxu0 0.0
        %1360 = vmatprep.subr.mxu0 0.0
        %1361 = vmatpush1.xpose.msra.mxu0 0.0
        %1362 = vmatprep.subr.mxu0 0.0
        %1363 = vmatpush1.xpose.msra.mxu0 0.0
        %1364 = vmatprep.subr.mxu0 0.0
        %1365 = vmatpush1.xpose.msra.mxu0 0.0
        %1366 = vmatprep.subr.mxu0 0.0
        %1367 = vmatpush1.xpose.msra.mxu0 0.0
        %1368 = vmatprep.subr.mxu0 0.0
        %1369 = vmatpush1.xpose.msra.mxu0 0.0
        %1370 = vmatprep.subr.mxu0 0.0
        %1371 = vmatpush1.xpose.msra.mxu0 0.0
        %1372 = vmatprep.subr.mxu0 0.0
        %1373 = vmatpush1.xpose.msra.mxu0 0.0
        %1374 = vmatprep.subr.mxu0 0.0
        %1375 = vmatpush1.xpose.msra.mxu0 0.0
        %1376 = vmatprep.subr.mxu0 0.0
        %1377 = vmatpush1.xpose.msra.mxu0 0.0
        %1378 = vmatprep.subr.mxu0 0.0
        %1379 = vmatpush1.xpose.msra.mxu0 0.0
        %1380 = vmatprep.subr.mxu0 0.0
        %1381 = vmatpush1.xpose.msra.mxu0 0.0
        %1382 = vmatprep.subr.mxu0 0.0
        %1383 = vmatpush1.xpose.msra.mxu0 0.0
        %1384 = vmatprep.subr.mxu0 0.0
        %1385 = vmatpush1.xpose.msra.mxu0 0.0
        %1386 = vmatprep.subr.mxu0 0.0
        %1387 = vmatpush1.xpose.msra.mxu0 0.0
        %1388 = vmatprep.subr.mxu0 0.0
        %1389 = vmatpush1.xpose.msra.mxu0 0.0
        %1390 = vmatprep.subr.mxu0 0.0
        %1391 = vmatpush1.xpose.msra.mxu0 0.0
        %1392 = vmatprep.subr.mxu0 0.0
        %1393 = vmatpush1.xpose.msra.mxu0 0.0
        %1394 = vmatprep.subr.mxu0 0.0
        %1395 = vmatpush1.xpose.msra.mxu0 0.0
        %1396 = vmatprep.subr.mxu0 0.0
        %1397 = vmatpush1.xpose.msra.mxu0 0.0
        %1398 = vmatprep.subr.mxu0 0.0
        %1399 = vmatpush1.xpose.msra.mxu0 0.0
        %1400 = vmatprep.subr.mxu0 0.0
        %1401 = vmatpush1.xpose.msra.mxu0 0.0
        %1402 = vmatprep.mubr.f32.mxu0 0.0
        %1403 = vmatmul.mubr.f32.gmra.mrb[0].mxu0 %v1333
        %v1404 = vpop.f32.mrb[0].mxu0
        %v1405 = vadd.f32 0.0, %v1404
        %v1406 = vpop.f32.mrb[0].mxu0
        %1407 = vdwg.mxu0
        %v1409 = vsel %vm1255, %v1249, 0
        %v1412 = vsel %vm1255, %v1253, 0
        %1414 = vmatprep.subr.mxu0 0.0
        %1415 = vmatpush1.xpose.msra.mxu0 %v1412
        %1416 = vmatprep.subr.mxu0 0.0
        %1417 = vmatpush1.xpose.msra.mxu0 0.0
        %1418 = vmatprep.subr.mxu0 0.0
        %1419 = vmatpush1.xpose.msra.mxu0 0.0
        %1420 = vmatprep.subr.mxu0 0.0
        %1421 = vmatpush1.xpose.msra.mxu0 0.0
        %1422 = vmatprep.subr.mxu0 0.0
        %1423 = vmatpush1.xpose.msra.mxu0 0.0
        %1424 = vmatprep.subr.mxu0 0.0
        %1425 = vmatpush1.xpose.msra.mxu0 0.0
        %1426 = vmatprep.subr.mxu0 0.0
        %1427 = vmatpush1.xpose.msra.mxu0 0.0
        %1428 = vmatprep.subr.mxu0 0.0
        %1429 = vmatpush1.xpose.msra.mxu0 0.0
        %1430 = vmatprep.subr.mxu0 0.0
        %1431 = vmatpush1.xpose.msra.mxu0 0.0
        %1432 = vmatprep.subr.mxu0 0.0
        %1433 = vmatpush1.xpose.msra.mxu0 0.0
        %1434 = vmatprep.subr.mxu0 0.0
        %1435 = vmatpush1.xpose.msra.mxu0 0.0
        %1436 = vmatprep.subr.mxu0 0.0
        %1437 = vmatpush1.xpose.msra.mxu0 0.0
        %1438 = vmatprep.subr.mxu0 0.0
        %1439 = vmatpush1.xpose.msra.mxu0 0.0
        %1440 = vmatprep.subr.mxu0 0.0
        %1441 = vmatpush1.xpose.msra.mxu0 0.0
        %1442 = vmatprep.subr.mxu0 0.0
        %1443 = vmatpush1.xpose.msra.mxu0 0.0
        %1444 = vmatprep.subr.mxu0 0.0
        %1445 = vmatpush1.xpose.msra.mxu0 0.0
        %1446 = vmatprep.subr.mxu0 0.0
        %1447 = vmatpush1.xpose.msra.mxu0 0.0
        %1448 = vmatprep.subr.mxu0 0.0
        %1449 = vmatpush1.xpose.msra.mxu0 0.0
        %1450 = vmatprep.subr.mxu0 0.0
        %1451 = vmatpush1.xpose.msra.mxu0 0.0
        %1452 = vmatprep.subr.mxu0 0.0
        %1453 = vmatpush1.xpose.msra.mxu0 0.0
        %1454 = vmatprep.subr.mxu0 0.0
        %1455 = vmatpush1.xpose.msra.mxu0 0.0
        %1456 = vmatprep.subr.mxu0 0.0
        %1457 = vmatpush1.xpose.msra.mxu0 0.0
        %1458 = vmatprep.subr.mxu0 0.0
        %1459 = vmatpush1.xpose.msra.mxu0 0.0
        %1460 = vmatprep.subr.mxu0 0.0
        %1461 = vmatpush1.xpose.msra.mxu0 0.0
        %1462 = vmatprep.subr.mxu0 0.0
        %1463 = vmatpush1.xpose.msra.mxu0 0.0
        %1464 = vmatprep.subr.mxu0 0.0
        %1465 = vmatpush1.xpose.msra.mxu0 0.0
        %1466 = vmatprep.subr.mxu0 0.0
        %1467 = vmatpush1.xpose.msra.mxu0 0.0
        %1468 = vmatprep.subr.mxu0 0.0
        %1469 = vmatpush1.xpose.msra.mxu0 0.0
        %1470 = vmatprep.subr.mxu0 0.0
        %1471 = vmatpush1.xpose.msra.mxu0 0.0
        %1472 = vmatprep.subr.mxu0 0.0
        %1473 = vmatpush1.xpose.msra.mxu0 0.0
        %1474 = vmatprep.subr.mxu0 0.0
        %1475 = vmatpush1.xpose.msra.mxu0 0.0
        %1476 = vmatprep.subr.mxu0 0.0
        %1477 = vmatpush1.xpose.msra.mxu0 0.0
        %1478 = vmatprep.mubr.f32.mxu0 0.0
        %1479 = vmatmul.mubr.f32.gmra.mrb[0].mxu0 %v1409
        %v1480 = vpop.f32.mrb[0].mxu0
        %v1481 = vadd.f32 0.0, %v1480
        %v1482 = vpop.f32.mrb[0].mxu0
        %1483 = vdwg.mxu0
        %v1485 = vsel %vm1255, %v1250, 0
        %v1488 = vsel %vm1255, %v1254, 0
        %1490 = vmatprep.subr.mxu0 0.0
        %1491 = vmatpush1.xpose.msra.mxu0 %v1488
        %1492 = vmatprep.subr.mxu0 0.0
        %1493 = vmatpush1.xpose.msra.mxu0 0.0
        %1494 = vmatprep.subr.mxu0 0.0
        %1495 = vmatpush1.xpose.msra.mxu0 0.0
        %1496 = vmatprep.subr.mxu0 0.0
        %1497 = vmatpush1.xpose.msra.mxu0 0.0
        %1498 = vmatprep.subr.mxu0 0.0
        %1499 = vmatpush1.xpose.msra.mxu0 0.0
        %1500 = vmatprep.subr.mxu0 0.0
        %1501 = vmatpush1.xpose.msra.mxu0 0.0
        %1502 = vmatprep.subr.mxu0 0.0
        %1503 = vmatpush1.xpose.msra.mxu0 0.0
        %1504 = vmatprep.subr.mxu0 0.0
        %1505 = vmatpush1.xpose.msra.mxu0 0.0
        %1506 = vmatprep.subr.mxu0 0.0
        %1507 = vmatpush1.xpose.msra.mxu0 0.0
        %1508 = vmatprep.subr.mxu0 0.0
        %1509 = vmatpush1.xpose.msra.mxu0 0.0
        %1510 = vmatprep.subr.mxu0 0.0
        %1511 = vmatpush1.xpose.msra.mxu0 0.0
        %1512 = vmatprep.subr.mxu0 0.0
        %1513 = vmatpush1.xpose.msra.mxu0 0.0
        %1514 = vmatprep.subr.mxu0 0.0
        %1515 = vmatpush1.xpose.msra.mxu0 0.0
        %1516 = vmatprep.subr.mxu0 0.0
        %1517 = vmatpush1.xpose.msra.mxu0 0.0
        %1518 = vmatprep.subr.mxu0 0.0
        %1519 = vmatpush1.xpose.msra.mxu0 0.0
        %1520 = vmatprep.subr.mxu0 0.0
        %1521 = vmatpush1.xpose.msra.mxu0 0.0
        %1522 = vmatprep.subr.mxu0 0.0
        %1523 = vmatpush1.xpose.msra.mxu0 0.0
        %1524 = vmatprep.subr.mxu0 0.0
        %1525 = vmatpush1.xpose.msra.mxu0 0.0
        %1526 = vmatprep.subr.mxu0 0.0
        %1527 = vmatpush1.xpose.msra.mxu0 0.0
        %1528 = vmatprep.subr.mxu0 0.0
        %1529 = vmatpush1.xpose.msra.mxu0 0.0
        %1530 = vmatprep.subr.mxu0 0.0
        %1531 = vmatpush1.xpose.msra.mxu0 0.0
        %1532 = vmatprep.subr.mxu0 0.0
        %1533 = vmatpush1.xpose.msra.mxu0 0.0
        %1534 = vmatprep.subr.mxu0 0.0
        %1535 = vmatpush1.xpose.msra.mxu0 0.0
        %1536 = vmatprep.subr.mxu0 0.0
        %1537 = vmatpush1.xpose.msra.mxu0 0.0
        %1538 = vmatprep.subr.mxu0 0.0
        %1539 = vmatpush1.xpose.msra.mxu0 0.0
        %1540 = vmatprep.subr.mxu0 0.0
        %1541 = vmatpush1.xpose.msra.mxu0 0.0
        %1542 = vmatprep.subr.mxu0 0.0
        %1543 = vmatpush1.xpose.msra.mxu0 0.0
        %1544 = vmatprep.subr.mxu0 0.0
        %1545 = vmatpush1.xpose.msra.mxu0 0.0
        %1546 = vmatprep.subr.mxu0 0.0
        %1547 = vmatpush1.xpose.msra.mxu0 0.0
        %1548 = vmatprep.subr.mxu0 0.0
        %1549 = vmatpush1.xpose.msra.mxu0 0.0
        %1550 = vmatprep.subr.mxu0 0.0
        %1551 = vmatpush1.xpose.msra.mxu0 0.0
        %1552 = vmatprep.subr.mxu0 0.0
        %1553 = vmatpush1.xpose.msra.mxu0 0.0
        %1554 = vmatprep.mubr.f32.mxu0 0.0
        %1555 = vmatmul.mubr.f32.gmra.mrb[0].mxu0 %v1485
        %v1556 = vpop.f32.mrb[0].mxu0
        %v1557 = vadd.f32 0.0, %v1556
        %v1558 = vpop.f32.mrb[0].mxu0
        %1559 = vdwg.mxu0
        %v1560 = vsel %vm1255, %v1329, -inf
        %1561 = vmax.xlane.f32.xlu0 %v1560
        %v1562 = vpop.xlane.xlu0 %1561
        %v1563 = vsel %vm1255, %v1405, -inf
        %1564 = vmax.xlane.f32.xlu0 %v1563
        %v1565 = vpop.xlane.xlu0 %1564
        %v1566 = vsel %vm1255, %v1481, -inf
        %1567 = vmax.xlane.f32.xlu0 %v1566
        %v1568 = vpop.xlane.xlu0 %1567
        %v1569 = vsel %vm1255, %v1557, -inf
        %1570 = vmax.xlane.f32.xlu0 %v1569
        %v1571 = vpop.xlane.xlu0 %1570
        %v1572 = vsub.f32 %v1329, %v1562
        %v1573 = vsub.f32 %v1405, %v1565
        %v1574 = vsub.f32 %v1481, %v1568
        %v1575 = vsub.f32 %v1557, %v1571
        %v1576 = vmul.f32 %v1572, 1.442695
        %v1577 = vpow.pop %v1576
        %v1578 = vmul.f32 %v1573, 1.442695
        %v1579 = vpow.pop %v1578
        %v1580 = vmul.f32 %v1574, 1.442695
        %v1581 = vpow.pop %v1580
        %v1582 = vmul.f32 %v1575, 1.442695
        %v1583 = vpow.pop %v1582
        %v1584 = vsel %vm1255, %v1577, 0.0
        %1585 = vadd.xlane.f32.xlu0 %v1584
        %v1586 = vpop.xlane.xlu0 %1585
        %v1587 = vsel %vm1255, %v1579, 0.0
        %1588 = vadd.xlane.f32.xlu0 %v1587
        %v1589 = vpop.xlane.xlu0 %1588
        %v1590 = vsel %vm1255, %v1581, 0.0
        %1591 = vadd.xlane.f32.xlu0 %v1590
        %v1592 = vpop.xlane.xlu0 %1591
        %v1593 = vsel %vm1255, %v1583, 0.0
        %1594 = vadd.xlane.f32.xlu0 %v1593
        %v1595 = vpop.xlane.xlu0 %1594
        %v1596 = vrcp.pop %v1586
        %v1597 = vrcp.pop %v1589
        %v1598 = vrcp.pop %v1592
        %v1599 = vrcp.pop %v1595
        %v1600 = vmul.f32 %v1577, %v1596
        %v1601 = vmul.f32 %v1579, %v1597
        %v1602 = vmul.f32 %v1581, %v1598
        %v1603 = vmul.f32 %v1583, %v1599
        %1604 = vst.msk [vmem:[%s533] sm:$0xff] %vm1255, %v1600
        %1605 = vst.msk [vmem:[%s533 + $0x8] sm:$0xff] %vm1255, %v1601
        %1606 = vst.msk [vmem:[%s533 + $0x10] sm:$0xff] %vm1255, %v1602
        %1607 = vst.msk [vmem:[%s533 + $0x18] sm:$0xff] %vm1255, %v1603
        %v1608 = vld [vmem:[#allocation3] sm:$0xff]
        %v1609 = vld [vmem:[#allocation3 + $0x8] sm:$0xff]
        %v1610 = vld [vmem:[#allocation3 + $0x10] sm:$0xff]
        %v1611 = vld [vmem:[#allocation3 + $0x18] sm:$0xff]
        %v1613 = vsel %vm1255, %v1600, 0
        %1615 = vmatprep.subr.mxu0 0.0
        %1616 = vmatpush1.msra.mxu0 %v1608
        %1617 = vmatprep.subr.mxu0 0.0
        %1618 = vmatpush1.msra.mxu0 0.0
        %1619 = vmatprep.subr.mxu0 0.0
        %1620 = vmatpush1.msra.mxu0 0.0
        %1621 = vmatprep.subr.mxu0 0.0
        %1622 = vmatpush1.msra.mxu0 0.0
        %1623 = vmatprep.subr.mxu0 0.0
        %1624 = vmatpush1.msra.mxu0 0.0
        %1625 = vmatprep.subr.mxu0 0.0
        %1626 = vmatpush1.msra.mxu0 0.0
        %1627 = vmatprep.subr.mxu0 0.0
        %1628 = vmatpush1.msra.mxu0 0.0
        %1629 = vmatprep.subr.mxu0 0.0
        %1630 = vmatpush1.msra.mxu0 0.0
        %1631 = vmatprep.subr.mxu0 0.0
        %1632 = vmatpush1.msra.mxu0 0.0
        %1633 = vmatprep.subr.mxu0 0.0
        %1634 = vmatpush1.msra.mxu0 0.0
        %1635 = vmatprep.subr.mxu0 0.0
        %1636 = vmatpush1.msra.mxu0 0.0
        %1637 = vmatprep.subr.mxu0 0.0
        %1638 = vmatpush1.msra.mxu0 0.0
        %1639 = vmatprep.subr.mxu0 0.0
        %1640 = vmatpush1.msra.mxu0 0.0
        %1641 = vmatprep.subr.mxu0 0.0
        %1642 = vmatpush1.msra.mxu0 0.0
        %1643 = vmatprep.subr.mxu0 0.0
        %1644 = vmatpush1.msra.mxu0 0.0
        %1645 = vmatprep.subr.mxu0 0.0
        %1646 = vmatpush1.msra.mxu0 0.0
        %1647 = vmatprep.subr.mxu0 0.0
        %1648 = vmatpush1.msra.mxu0 0.0
        %1649 = vmatprep.subr.mxu0 0.0
        %1650 = vmatpush1.msra.mxu0 0.0
        %1651 = vmatprep.subr.mxu0 0.0
        %1652 = vmatpush1.msra.mxu0 0.0
        %1653 = vmatprep.subr.mxu0 0.0
        %1654 = vmatpush1.msra.mxu0 0.0
        %1655 = vmatprep.subr.mxu0 0.0
        %1656 = vmatpush1.msra.mxu0 0.0
        %1657 = vmatprep.subr.mxu0 0.0
        %1658 = vmatpush1.msra.mxu0 0.0
        %1659 = vmatprep.subr.mxu0 0.0
        %1660 = vmatpush1.msra.mxu0 0.0
        %1661 = vmatprep.subr.mxu0 0.0
        %1662 = vmatpush1.msra.mxu0 0.0
        %1663 = vmatprep.subr.mxu0 0.0
        %1664 = vmatpush1.msra.mxu0 0.0
        %1665 = vmatprep.subr.mxu0 0.0
        %1666 = vmatpush1.msra.mxu0 0.0
        %1667 = vmatprep.subr.mxu0 0.0
        %1668 = vmatpush1.msra.mxu0 0.0
        %1669 = vmatprep.subr.mxu0 0.0
        %1670 = vmatpush1.msra.mxu0 0.0
        %1671 = vmatprep.subr.mxu0 0.0
        %1672 = vmatpush1.msra.mxu0 0.0
        %1673 = vmatprep.subr.mxu0 0.0
        %1674 = vmatpush1.msra.mxu0 0.0
        %1675 = vmatprep.subr.mxu0 0.0
        %1676 = vmatpush1.msra.mxu0 0.0
        %1677 = vmatprep.subr.mxu0 0.0
        %1678 = vmatpush1.msra.mxu0 0.0
        %1679 = vmatprep.mubr.f32.mxu0 0.0
        %1680 = vmatmul.mubr.f32.gmra.mrb[0].mxu0 %v1613
        %v1681 = vpop.f32.mrb[0].mxu0
        %v1682 = vadd.f32 0.0, %v1681
        %v1683 = vpop.f32.mrb[0].mxu0
        %1684 = vdwg.mxu0
        %v1686 = vsel %vm1255, %v1601, 0
        %1688 = vmatprep.subr.mxu0 0.0
        %1689 = vmatpush1.msra.mxu0 %v1609
        %1690 = vmatprep.subr.mxu0 0.0
        %1691 = vmatpush1.msra.mxu0 0.0
        %1692 = vmatprep.subr.mxu0 0.0
        %1693 = vmatpush1.msra.mxu0 0.0
        %1694 = vmatprep.subr.mxu0 0.0
        %1695 = vmatpush1.msra.mxu0 0.0
        %1696 = vmatprep.subr.mxu0 0.0
        %1697 = vmatpush1.msra.mxu0 0.0
        %1698 = vmatprep.subr.mxu0 0.0
        %1699 = vmatpush1.msra.mxu0 0.0
        %1700 = vmatprep.subr.mxu0 0.0
        %1701 = vmatpush1.msra.mxu0 0.0
        %1702 = vmatprep.subr.mxu0 0.0
        %1703 = vmatpush1.msra.mxu0 0.0
        %1704 = vmatprep.subr.mxu0 0.0
        %1705 = vmatpush1.msra.mxu0 0.0
        %1706 = vmatprep.subr.mxu0 0.0
        %1707 = vmatpush1.msra.mxu0 0.0
        %1708 = vmatprep.subr.mxu0 0.0
        %1709 = vmatpush1.msra.mxu0 0.0
        %1710 = vmatprep.subr.mxu0 0.0
        %1711 = vmatpush1.msra.mxu0 0.0
        %1712 = vmatprep.subr.mxu0 0.0
        %1713 = vmatpush1.msra.mxu0 0.0
        %1714 = vmatprep.subr.mxu0 0.0
        %1715 = vmatpush1.msra.mxu0 0.0
        %1716 = vmatprep.subr.mxu0 0.0
        %1717 = vmatpush1.msra.mxu0 0.0
        %1718 = vmatprep.subr.mxu0 0.0
        %1719 = vmatpush1.msra.mxu0 0.0
        %1720 = vmatprep.subr.mxu0 0.0
        %1721 = vmatpush1.msra.mxu0 0.0
        %1722 = vmatprep.subr.mxu0 0.0
        %1723 = vmatpush1.msra.mxu0 0.0
        %1724 = vmatprep.subr.mxu0 0.0
        %1725 = vmatpush1.msra.mxu0 0.0
        %1726 = vmatprep.subr.mxu0 0.0
        %1727 = vmatpush1.msra.mxu0 0.0
        %1728 = vmatprep.subr.mxu0 0.0
        %1729 = vmatpush1.msra.mxu0 0.0
        %1730 = vmatprep.subr.mxu0 0.0
        %1731 = vmatpush1.msra.mxu0 0.0
        %1732 = vmatprep.subr.mxu0 0.0
        %1733 = vmatpush1.msra.mxu0 0.0
        %1734 = vmatprep.subr.mxu0 0.0
        %1735 = vmatpush1.msra.mxu0 0.0
        %1736 = vmatprep.subr.mxu0 0.0
        %1737 = vmatpush1.msra.mxu0 0.0
        %1738 = vmatprep.subr.mxu0 0.0
        %1739 = vmatpush1.msra.mxu0 0.0
        %1740 = vmatprep.subr.mxu0 0.0
        %1741 = vmatpush1.msra.mxu0 0.0
        %1742 = vmatprep.subr.mxu0 0.0
        %1743 = vmatpush1.msra.mxu0 0.0
        %1744 = vmatprep.subr.mxu0 0.0
        %1745 = vmatpush1.msra.mxu0 0.0
        %1746 = vmatprep.subr.mxu0 0.0
        %1747 = vmatpush1.msra.mxu0 0.0
        %1748 = vmatprep.subr.mxu0 0.0
        %1749 = vmatpush1.msra.mxu0 0.0
        %1750 = vmatprep.subr.mxu0 0.0
        %1751 = vmatpush1.msra.mxu0 0.0
        %1752 = vmatprep.mubr.f32.mxu0 0.0
        %1753 = vmatmul.mubr.f32.gmra.mrb[0].mxu0 %v1686
        %v1754 = vpop.f32.mrb[0].mxu0
        %v1755 = vadd.f32 0.0, %v1754
        %v1756 = vpop.f32.mrb[0].mxu0
        %1757 = vdwg.mxu0
        %v1759 = vsel %vm1255, %v1602, 0
        %1761 = vmatprep.subr.mxu0 0.0
        %1762 = vmatpush1.msra.mxu0 %v1610
        %1763 = vmatprep.subr.mxu0 0.0
        %1764 = vmatpush1.msra.mxu0 0.0
        %1765 = vmatprep.subr.mxu0 0.0
        %1766 = vmatpush1.msra.mxu0 0.0
        %1767 = vmatprep.subr.mxu0 0.0
        %1768 = vmatpush1.msra.mxu0 0.0
        %1769 = vmatprep.subr.mxu0 0.0
        %1770 = vmatpush1.msra.mxu0 0.0
        %1771 = vmatprep.subr.mxu0 0.0
        %1772 = vmatpush1.msra.mxu0 0.0
        %1773 = vmatprep.subr.mxu0 0.0
        %1774 = vmatpush1.msra.mxu0 0.0
        %1775 = vmatprep.subr.mxu0 0.0
        %1776 = vmatpush1.msra.mxu0 0.0
        %1777 = vmatprep.subr.mxu0 0.0
        %1778 = vmatpush1.msra.mxu0 0.0
        %1779 = vmatprep.subr.mxu0 0.0
        %1780 = vmatpush1.msra.mxu0 0.0
        %1781 = vmatprep.subr.mxu0 0.0
        %1782 = vmatpush1.msra.mxu0 0.0
        %1783 = vmatprep.subr.mxu0 0.0
        %1784 = vmatpush1.msra.mxu0 0.0
        %1785 = vmatprep.subr.mxu0 0.0
        %1786 = vmatpush1.msra.mxu0 0.0
        %1787 = vmatprep.subr.mxu0 0.0
        %1788 = vmatpush1.msra.mxu0 0.0
        %1789 = vmatprep.subr.mxu0 0.0
        %1790 = vmatpush1.msra.mxu0 0.0
        %1791 = vmatprep.subr.mxu0 0.0
        %1792 = vmatpush1.msra.mxu0 0.0
        %1793 = vmatprep.subr.mxu0 0.0
        %1794 = vmatpush1.msra.mxu0 0.0
        %1795 = vmatprep.subr.mxu0 0.0
        %1796 = vmatpush1.msra.mxu0 0.0
        %1797 = vmatprep.subr.mxu0 0.0
        %1798 = vmatpush1.msra.mxu0 0.0
        %1799 = vmatprep.subr.mxu0 0.0
        %1800 = vmatpush1.msra.mxu0 0.0
        %1801 = vmatprep.subr.mxu0 0.0
        %1802 = vmatpush1.msra.mxu0 0.0
        %1803 = vmatprep.subr.mxu0 0.0
        %1804 = vmatpush1.msra.mxu0 0.0
        %1805 = vmatprep.subr.mxu0 0.0
        %1806 = vmatpush1.msra.mxu0 0.0
        %1807 = vmatprep.subr.mxu0 0.0
        %1808 = vmatpush1.msra.mxu0 0.0
        %1809 = vmatprep.subr.mxu0 0.0
        %1810 = vmatpush1.msra.mxu0 0.0
        %1811 = vmatprep.subr.mxu0 0.0
        %1812 = vmatpush1.msra.mxu0 0.0
        %1813 = vmatprep.subr.mxu0 0.0
        %1814 = vmatpush1.msra.mxu0 0.0
        %1815 = vmatprep.subr.mxu0 0.0
        %1816 = vmatpush1.msra.mxu0 0.0
        %1817 = vmatprep.subr.mxu0 0.0
        %1818 = vmatpush1.msra.mxu0 0.0
        %1819 = vmatprep.subr.mxu0 0.0
        %1820 = vmatpush1.msra.mxu0 0.0
        %1821 = vmatprep.subr.mxu0 0.0
        %1822 = vmatpush1.msra.mxu0 0.0
        %1823 = vmatprep.subr.mxu0 0.0
        %1824 = vmatpush1.msra.mxu0 0.0
        %1825 = vmatprep.mubr.f32.mxu0 0.0
        %1826 = vmatmul.mubr.f32.gmra.mrb[0].mxu0 %v1759
        %v1827 = vpop.f32.mrb[0].mxu0
        %v1828 = vadd.f32 0.0, %v1827
        %v1829 = vpop.f32.mrb[0].mxu0
        %1830 = vdwg.mxu0
        %v1832 = vsel %vm1255, %v1603, 0
        %1834 = vmatprep.subr.mxu0 0.0
        %1835 = vmatpush1.msra.mxu0 %v1611
        %1836 = vmatprep.subr.mxu0 0.0
        %1837 = vmatpush1.msra.mxu0 0.0
        %1838 = vmatprep.subr.mxu0 0.0
        %1839 = vmatpush1.msra.mxu0 0.0
        %1840 = vmatprep.subr.mxu0 0.0
        %1841 = vmatpush1.msra.mxu0 0.0
        %1842 = vmatprep.subr.mxu0 0.0
        %1843 = vmatpush1.msra.mxu0 0.0
        %1844 = vmatprep.subr.mxu0 0.0
        %1845 = vmatpush1.msra.mxu0 0.0
        %1846 = vmatprep.subr.mxu0 0.0
        %1847 = vmatpush1.msra.mxu0 0.0
        %1848 = vmatprep.subr.mxu0 0.0
        %1849 = vmatpush1.msra.mxu0 0.0
        %1850 = vmatprep.subr.mxu0 0.0
        %1851 = vmatpush1.msra.mxu0 0.0
        %1852 = vmatprep.subr.mxu0 0.0
        %1853 = vmatpush1.msra.mxu0 0.0
        %1854 = vmatprep.subr.mxu0 0.0
        %1855 = vmatpush1.msra.mxu0 0.0
        %1856 = vmatprep.subr.mxu0 0.0
        %1857 = vmatpush1.msra.mxu0 0.0
        %1858 = vmatprep.subr.mxu0 0.0
        %1859 = vmatpush1.msra.mxu0 0.0
        %1860 = vmatprep.subr.mxu0 0.0
        %1861 = vmatpush1.msra.mxu0 0.0
        %1862 = vmatprep.subr.mxu0 0.0
        %1863 = vmatpush1.msra.mxu0 0.0
        %1864 = vmatprep.subr.mxu0 0.0
        %1865 = vmatpush1.msra.mxu0 0.0
        %1866 = vmatprep.subr.mxu0 0.0
        %1867 = vmatpush1.msra.mxu0 0.0
        %1868 = vmatprep.subr.mxu0 0.0
        %1869 = vmatpush1.msra.mxu0 0.0
        %1870 = vmatprep.subr.mxu0 0.0
        %1871 = vmatpush1.msra.mxu0 0.0
        %1872 = vmatprep.subr.mxu0 0.0
        %1873 = vmatpush1.msra.mxu0 0.0
        %1874 = vmatprep.subr.mxu0 0.0
        %1875 = vmatpush1.msra.mxu0 0.0
        %1876 = vmatprep.subr.mxu0 0.0
        %1877 = vmatpush1.msra.mxu0 0.0
        %1878 = vmatprep.subr.mxu0 0.0
        %1879 = vmatpush1.msra.mxu0 0.0
        %1880 = vmatprep.subr.mxu0 0.0
        %1881 = vmatpush1.msra.mxu0 0.0
        %1882 = vmatprep.subr.mxu0 0.0
        %1883 = vmatpush1.msra.mxu0 0.0
        %1884 = vmatprep.subr.mxu0 0.0
        %1885 = vmatpush1.msra.mxu0 0.0
        %1886 = vmatprep.subr.mxu0 0.0
        %1887 = vmatpush1.msra.mxu0 0.0
        %1888 = vmatprep.subr.mxu0 0.0
        %1889 = vmatpush1.msra.mxu0 0.0
        %1890 = vmatprep.subr.mxu0 0.0
        %1891 = vmatpush1.msra.mxu0 0.0
        %1892 = vmatprep.subr.mxu0 0.0
        %1893 = vmatpush1.msra.mxu0 0.0
        %1894 = vmatprep.subr.mxu0 0.0
        %1895 = vmatpush1.msra.mxu0 0.0
        %1896 = vmatprep.subr.mxu0 0.0
        %1897 = vmatpush1.msra.mxu0 0.0
        %1898 = vmatprep.mubr.f32.mxu0 0.0
        %1899 = vmatmul.mubr.f32.gmra.mrb[0].mxu0 %v1832
        %v1900 = vpop.f32.mrb[0].mxu0
        %v1901 = vadd.f32 0.0, %v1900
        %v1902 = vpop.f32.mrb[0].mxu0
        %1903 = vdwg.mxu0
        %v1904 = vld [vmem:[#allocation15] sm:$0xff]
        %v1905 = vld [vmem:[#allocation15 + $0x8] sm:$0xff]
        %v1906 = vld [vmem:[#allocation15 + $0x10] sm:$0xff]
        %v1907 = vld [vmem:[#allocation15 + $0x18] sm:$0xff]
        %v1909 = vsel %vm1255, %v1682, 0
        %1911 = vmatprep.subr.mxu0 0.0
        %1912 = vmatpush1.msra.mxu0 %v1904
        %1913 = vmatprep.subr.mxu0 0.0
        %1914 = vmatpush1.msra.mxu0 0.0
        %1915 = vmatprep.subr.mxu0 0.0
        %1916 = vmatpush1.msra.mxu0 0.0
        %1917 = vmatprep.subr.mxu0 0.0
        %1918 = vmatpush1.msra.mxu0 0.0
        %1919 = vmatprep.subr.mxu0 0.0
        %1920 = vmatpush1.msra.mxu0 0.0
        %1921 = vmatprep.subr.mxu0 0.0
        %1922 = vmatpush1.msra.mxu0 0.0
        %1923 = vmatprep.subr.mxu0 0.0
        %1924 = vmatpush1.msra.mxu0 0.0
        %1925 = vmatprep.subr.mxu0 0.0
        %1926 = vmatpush1.msra.mxu0 0.0
        %1927 = vmatprep.subr.mxu0 0.0
        %1928 = vmatpush1.msra.mxu0 0.0
        %1929 = vmatprep.subr.mxu0 0.0
        %1930 = vmatpush1.msra.mxu0 0.0
        %1931 = vmatprep.subr.mxu0 0.0
        %1932 = vmatpush1.msra.mxu0 0.0
        %1933 = vmatprep.subr.mxu0 0.0
        %1934 = vmatpush1.msra.mxu0 0.0
        %1935 = vmatprep.subr.mxu0 0.0
        %1936 = vmatpush1.msra.mxu0 0.0
        %1937 = vmatprep.subr.mxu0 0.0
        %1938 = vmatpush1.msra.mxu0 0.0
        %1939 = vmatprep.subr.mxu0 0.0
        %1940 = vmatpush1.msra.mxu0 0.0
        %1941 = vmatprep.subr.mxu0 0.0
        %1942 = vmatpush1.msra.mxu0 0.0
        %1943 = vmatprep.subr.mxu0 0.0
        %1944 = vmatpush1.msra.mxu0 0.0
        %1945 = vmatprep.subr.mxu0 0.0
        %1946 = vmatpush1.msra.mxu0 0.0
        %1947 = vmatprep.subr.mxu0 0.0
        %1948 = vmatpush1.msra.mxu0 0.0
        %1949 = vmatprep.subr.mxu0 0.0
        %1950 = vmatpush1.msra.mxu0 0.0
        %1951 = vmatprep.subr.mxu0 0.0
        %1952 = vmatpush1.msra.mxu0 0.0
        %1953 = vmatprep.subr.mxu0 0.0
        %1954 = vmatpush1.msra.mxu0 0.0
        %1955 = vmatprep.subr.mxu0 0.0
        %1956 = vmatpush1.msra.mxu0 0.0
        %1957 = vmatprep.subr.mxu0 0.0
        %1958 = vmatpush1.msra.mxu0 0.0
        %1959 = vmatprep.subr.mxu0 0.0
        %1960 = vmatpush1.msra.mxu0 0.0
        %1961 = vmatprep.subr.mxu0 0.0
        %1962 = vmatpush1.msra.mxu0 0.0
        %1963 = vmatprep.subr.mxu0 0.0
        %1964 = vmatpush1.msra.mxu0 0.0
        %1965 = vmatprep.subr.mxu0 0.0
        %1966 = vmatpush1.msra.mxu0 0.0
        %1967 = vmatprep.subr.mxu0 0.0
        %1968 = vmatpush1.msra.mxu0 0.0
        %1969 = vmatprep.subr.mxu0 0.0
        %1970 = vmatpush1.msra.mxu0 0.0
        %1971 = vmatprep.subr.mxu0 0.0
        %1972 = vmatpush1.msra.mxu0 0.0
        %1973 = vmatprep.subr.mxu0 0.0
        %1974 = vmatpush1.msra.mxu0 0.0
        %1975 = vmatprep.mubr.f32.mxu0 0.0
        %1976 = vmatmul.mubr.f32.gmra.mrb[0].mxu0 %v1909
        %v1977 = vpop.f32.mrb[0].mxu0
        %v1978 = vadd.f32 0.0, %v1977
        %v1979 = vpop.f32.mrb[0].mxu0
        %1980 = vdwg.mxu0
        %v1982 = vsel %vm1255, %v1755, 0
        %1984 = vmatprep.subr.mxu0 0.0
        %1985 = vmatpush1.msra.mxu0 %v1905
        %1986 = vmatprep.subr.mxu0 0.0
        %1987 = vmatpush1.msra.mxu0 0.0
        %1988 = vmatprep.subr.mxu0 0.0
        %1989 = vmatpush1.msra.mxu0 0.0
        %1990 = vmatprep.subr.mxu0 0.0
        %1991 = vmatpush1.msra.mxu0 0.0
        %1992 = vmatprep.subr.mxu0 0.0
        %1993 = vmatpush1.msra.mxu0 0.0
        %1994 = vmatprep.subr.mxu0 0.0
        %1995 = vmatpush1.msra.mxu0 0.0
        %1996 = vmatprep.subr.mxu0 0.0
        %1997 = vmatpush1.msra.mxu0 0.0
        %1998 = vmatprep.subr.mxu0 0.0
        %1999 = vmatpush1.msra.mxu0 0.0
        %2000 = vmatprep.subr.mxu0 0.0
        %2001 = vmatpush1.msra.mxu0 0.0
        %2002 = vmatprep.subr.mxu0 0.0
        %2003 = vmatpush1.msra.mxu0 0.0
        %2004 = vmatprep.subr.mxu0 0.0
        %2005 = vmatpush1.msra.mxu0 0.0
        %2006 = vmatprep.subr.mxu0 0.0
        %2007 = vmatpush1.msra.mxu0 0.0
        %2008 = vmatprep.subr.mxu0 0.0
        %2009 = vmatpush1.msra.mxu0 0.0
        %2010 = vmatprep.subr.mxu0 0.0
        %2011 = vmatpush1.msra.mxu0 0.0
        %2012 = vmatprep.subr.mxu0 0.0
        %2013 = vmatpush1.msra.mxu0 0.0
        %2014 = vmatprep.subr.mxu0 0.0
        %2015 = vmatpush1.msra.mxu0 0.0
        %2016 = vmatprep.subr.mxu0 0.0
        %2017 = vmatpush1.msra.mxu0 0.0
        %2018 = vmatprep.subr.mxu0 0.0
        %2019 = vmatpush1.msra.mxu0 0.0
        %2020 = vmatprep.subr.mxu0 0.0
        %2021 = vmatpush1.msra.mxu0 0.0
        %2022 = vmatprep.subr.mxu0 0.0
        %2023 = vmatpush1.msra.mxu0 0.0
        %2024 = vmatprep.subr.mxu0 0.0
        %2025 = vmatpush1.msra.mxu0 0.0
        %2026 = vmatprep.subr.mxu0 0.0
        %2027 = vmatpush1.msra.mxu0 0.0
        %2028 = vmatprep.subr.mxu0 0.0
        %2029 = vmatpush1.msra.mxu0 0.0
        %2030 = vmatprep.subr.mxu0 0.0
        %2031 = vmatpush1.msra.mxu0 0.0
        %2032 = vmatprep.subr.mxu0 0.0
        %2033 = vmatpush1.msra.mxu0 0.0
        %2034 = vmatprep.subr.mxu0 0.0
        %2035 = vmatpush1.msra.mxu0 0.0
        %2036 = vmatprep.subr.mxu0 0.0
        %2037 = vmatpush1.msra.mxu0 0.0
        %2038 = vmatprep.subr.mxu0 0.0
        %2039 = vmatpush1.msra.mxu0 0.0
        %2040 = vmatprep.subr.mxu0 0.0
        %2041 = vmatpush1.msra.mxu0 0.0
        %2042 = vmatprep.subr.mxu0 0.0
        %2043 = vmatpush1.msra.mxu0 0.0
        %2044 = vmatprep.subr.mxu0 0.0
        %2045 = vmatpush1.msra.mxu0 0.0
        %2046 = vmatprep.subr.mxu0 0.0
        %2047 = vmatpush1.msra.mxu0 0.0
        %2048 = vmatprep.mubr.f32.mxu0 0.0
        %2049 = vmatmul.mubr.f32.gmra.mrb[0].mxu0 %v1982
        %v2050 = vpop.f32.mrb[0].mxu0
        %v2051 = vadd.f32 0.0, %v2050
        %v2052 = vpop.f32.mrb[0].mxu0
        %2053 = vdwg.mxu0
        %v2055 = vsel %vm1255, %v1828, 0
        %2057 = vmatprep.subr.mxu0 0.0
        %2058 = vmatpush1.msra.mxu0 %v1906
        %2059 = vmatprep.subr.mxu0 0.0
        %2060 = vmatpush1.msra.mxu0 0.0
        %2061 = vmatprep.subr.mxu0 0.0
        %2062 = vmatpush1.msra.mxu0 0.0
        %2063 = vmatprep.subr.mxu0 0.0
        %2064 = vmatpush1.msra.mxu0 0.0
        %2065 = vmatprep.subr.mxu0 0.0
        %2066 = vmatpush1.msra.mxu0 0.0
        %2067 = vmatprep.subr.mxu0 0.0
        %2068 = vmatpush1.msra.mxu0 0.0
        %2069 = vmatprep.subr.mxu0 0.0
        %2070 = vmatpush1.msra.mxu0 0.0
        %2071 = vmatprep.subr.mxu0 0.0
        %2072 = vmatpush1.msra.mxu0 0.0
        %2073 = vmatprep.subr.mxu0 0.0
        %2074 = vmatpush1.msra.mxu0 0.0
        %2075 = vmatprep.subr.mxu0 0.0
        %2076 = vmatpush1.msra.mxu0 0.0
        %2077 = vmatprep.subr.mxu0 0.0
        %2078 = vmatpush1.msra.mxu0 0.0
        %2079 = vmatprep.subr.mxu0 0.0
        %2080 = vmatpush1.msra.mxu0 0.0
        %2081 = vmatprep.subr.mxu0 0.0
        %2082 = vmatpush1.msra.mxu0 0.0
        %2083 = vmatprep.subr.mxu0 0.0
        %2084 = vmatpush1.msra.mxu0 0.0
        %2085 = vmatprep.subr.mxu0 0.0
        %2086 = vmatpush1.msra.mxu0 0.0
        %2087 = vmatprep.subr.mxu0 0.0
        %2088 = vmatpush1.msra.mxu0 0.0
        %2089 = vmatprep.subr.mxu0 0.0
        %2090 = vmatpush1.msra.mxu0 0.0
        %2091 = vmatprep.subr.mxu0 0.0
        %2092 = vmatpush1.msra.mxu0 0.0
        %2093 = vmatprep.subr.mxu0 0.0
        %2094 = vmatpush1.msra.mxu0 0.0
        %2095 = vmatprep.subr.mxu0 0.0
        %2096 = vmatpush1.msra.mxu0 0.0
        %2097 = vmatprep.subr.mxu0 0.0
        %2098 = vmatpush1.msra.mxu0 0.0
        %2099 = vmatprep.subr.mxu0 0.0
        %2100 = vmatpush1.msra.mxu0 0.0
        %2101 = vmatprep.subr.mxu0 0.0
        %2102 = vmatpush1.msra.mxu0 0.0
        %2103 = vmatprep.subr.mxu0 0.0
        %2104 = vmatpush1.msra.mxu0 0.0
        %2105 = vmatprep.subr.mxu0 0.0
        %2106 = vmatpush1.msra.mxu0 0.0
        %2107 = vmatprep.subr.mxu0 0.0
        %2108 = vmatpush1.msra.mxu0 0.0
        %2109 = vmatprep.subr.mxu0 0.0
        %2110 = vmatpush1.msra.mxu0 0.0
        %2111 = vmatprep.subr.mxu0 0.0
        %2112 = vmatpush1.msra.mxu0 0.0
        %2113 = vmatprep.subr.mxu0 0.0
        %2114 = vmatpush1.msra.mxu0 0.0
        %2115 = vmatprep.subr.mxu0 0.0
        %2116 = vmatpush1.msra.mxu0 0.0
        %2117 = vmatprep.subr.mxu0 0.0
        %2118 = vmatpush1.msra.mxu0 0.0
        %2119 = vmatprep.subr.mxu0 0.0
        %2120 = vmatpush1.msra.mxu0 0.0
        %2121 = vmatprep.mubr.f32.mxu0 0.0
        %2122 = vmatmul.mubr.f32.gmra.mrb[0].mxu0 %v2055
        %v2123 = vpop.f32.mrb[0].mxu0
        %v2124 = vadd.f32 0.0, %v2123
        %v2125 = vpop.f32.mrb[0].mxu0
        %2126 = vdwg.mxu0
        %v2128 = vsel %vm1255, %v1901, 0
        %2130 = vmatprep.subr.mxu0 0.0
        %2131 = vmatpush1.msra.mxu0 %v1907
        %2132 = vmatprep.subr.mxu0 0.0
        %2133 = vmatpush1.msra.mxu0 0.0
        %2134 = vmatprep.subr.mxu0 0.0
        %2135 = vmatpush1.msra.mxu0 0.0
        %2136 = vmatprep.subr.mxu0 0.0
        %2137 = vmatpush1.msra.mxu0 0.0
        %2138 = vmatprep.subr.mxu0 0.0
        %2139 = vmatpush1.msra.mxu0 0.0
        %2140 = vmatprep.subr.mxu0 0.0
        %2141 = vmatpush1.msra.mxu0 0.0
        %2142 = vmatprep.subr.mxu0 0.0
        %2143 = vmatpush1.msra.mxu0 0.0
        %2144 = vmatprep.subr.mxu0 0.0
        %2145 = vmatpush1.msra.mxu0 0.0
        %2146 = vmatprep.subr.mxu0 0.0
        %2147 = vmatpush1.msra.mxu0 0.0
        %2148 = vmatprep.subr.mxu0 0.0
        %2149 = vmatpush1.msra.mxu0 0.0
        %2150 = vmatprep.subr.mxu0 0.0
        %2151 = vmatpush1.msra.mxu0 0.0
        %2152 = vmatprep.subr.mxu0 0.0
        %2153 = vmatpush1.msra.mxu0 0.0
        %2154 = vmatprep.subr.mxu0 0.0
        %2155 = vmatpush1.msra.mxu0 0.0
        %2156 = vmatprep.subr.mxu0 0.0
        %2157 = vmatpush1.msra.mxu0 0.0
        %2158 = vmatprep.subr.mxu0 0.0
        %2159 = vmatpush1.msra.mxu0 0.0
        %2160 = vmatprep.subr.mxu0 0.0
        %2161 = vmatpush1.msra.mxu0 0.0
        %2162 = vmatprep.subr.mxu0 0.0
        %2163 = vmatpush1.msra.mxu0 0.0
        %2164 = vmatprep.subr.mxu0 0.0
        %2165 = vmatpush1.msra.mxu0 0.0
        %2166 = vmatprep.subr.mxu0 0.0
        %2167 = vmatpush1.msra.mxu0 0.0
        %2168 = vmatprep.subr.mxu0 0.0
        %2169 = vmatpush1.msra.mxu0 0.0
        %2170 = vmatprep.subr.mxu0 0.0
        %2171 = vmatpush1.msra.mxu0 0.0
        %2172 = vmatprep.subr.mxu0 0.0
        %2173 = vmatpush1.msra.mxu0 0.0
        %2174 = vmatprep.subr.mxu0 0.0
        %2175 = vmatpush1.msra.mxu0 0.0
        %2176 = vmatprep.subr.mxu0 0.0
        %2177 = vmatpush1.msra.mxu0 0.0
        %2178 = vmatprep.subr.mxu0 0.0
        %2179 = vmatpush1.msra.mxu0 0.0
        %2180 = vmatprep.subr.mxu0 0.0
        %2181 = vmatpush1.msra.mxu0 0.0
        %2182 = vmatprep.subr.mxu0 0.0
        %2183 = vmatpush1.msra.mxu0 0.0
        %2184 = vmatprep.subr.mxu0 0.0
        %2185 = vmatpush1.msra.mxu0 0.0
        %2186 = vmatprep.subr.mxu0 0.0
        %2187 = vmatpush1.msra.mxu0 0.0
        %2188 = vmatprep.subr.mxu0 0.0
        %2189 = vmatpush1.msra.mxu0 0.0
        %2190 = vmatprep.subr.mxu0 0.0
        %2191 = vmatpush1.msra.mxu0 0.0
        %2192 = vmatprep.subr.mxu0 0.0
        %2193 = vmatpush1.msra.mxu0 0.0
        %2194 = vmatprep.mubr.f32.mxu0 0.0
        %2195 = vmatmul.mubr.f32.gmra.mrb[0].mxu0 %v2128
        %v2196 = vpop.f32.mrb[0].mxu0
        %v2197 = vadd.f32 0.0, %v2196
        %v2198 = vpop.f32.mrb[0].mxu0
        %2199 = vdwg.mxu0
        %v2200 = vsel %vm997, %v1978, 0.0
        %v2201 = vsel %vm997, %v2051, 0.0
        %v2202 = vadd.f32 %v2200, %v2201
        %v2203 = vsel %vm997, %v2124, 0.0
        %v2204 = vadd.f32 %v2202, %v2203
        %v2205 = vsel %vm997, %v2197, 0.0
        %v2206 = vadd.f32 %v2204, %v2205
        %v2207 = vadd.f32 %v2206, %v996
        %2208 = vst.msk [vmem:[%s526] sm:$0xff] %vm997, %v2207
        %s2209 = sand.u32 %s264, 1
        %s2210 = scalar_lea.sflag [#allocation6], %s2209
        %s2211 = sand.u32 %s264, 1
        %s2212 = smul.addr %s2211, 8
        %s2213 = scalar_lea.vmem [#allocation16], %s2212
        %s2214 = sand.u32 %s292, 1
        %s2215 = scalar_lea.sflag [#allocation18], %s2214
        %s2216 = sand.u32 %s292, 1
        %s2217 = smul.addr %s2216, 32
        %s2218 = scalar_lea.vmem [#allocation17], %s2217
        // Predicated region
        $region89: #{tpu_custom_call.1} parent=55 // pred_check
          %p2219 = pneg %p274
        $region90: #{tpu_custom_call.1} parent=55 // pred_check_branch
          %2221 = sbr.rel (%p2219) target = $region92
        $region91: #{tpu_custom_call.1} parent=55 // pred_region
          %s2223 = ssub.s32 128, 128
          %2224 = vsyncadd %s2210, %s2223
          %s2225 = sadd.s32 %s41, %s40
          %s2226 = smul.addr %s2225, 128
          %s2227 = scalar_lea.hbm %s9, %s2226
          %s2229 = sshll.u32 %s2213, 4
          %s2230 = int_to_ptr.vmem [resolvable:$true] %s2229
          %2232 = dma.vmem_to_hbm [thread:$0]  %s2230, 128, %s2227, %s2210
        $region92: #{tpu_custom_call.1} parent=55 // pred_fallthru
          _
        // Predicated region
        $region93: #{tpu_custom_call.1} parent=55 // pred_check
          %p2233 = pneg %p302
        $region94: #{tpu_custom_call.1} parent=55 // pred_check_branch
          %2235 = sbr.rel (%p2233) target = $region96
        $region95: #{tpu_custom_call.1} parent=55 // pred_region
          %s2237 = ssub.s32 512, 512
          %2238 = vsyncadd %s2215, %s2237
          %s2239 = smul.addr %s40, 4
          %s2240 = sadd.s32 %s41, %s2239
          %s2241 = smul.addr %s2240, 128
          %s2242 = scalar_lea.hbm %s10, %s2241
          %s2243 = sshll.u32 %s2218, 4
          %s2244 = int_to_ptr.vmem [resolvable:$true] %s2243
          %2249 = dma.vmem_to_hbm [thread:$0]  %s2244, 512, %s2242, %s2215, 128, 128, 8
        $region96: #{tpu_custom_call.1} parent=55 // pred_fallthru
          _
      $region56: #{tpu_custom_call.1} parent=5 // pred_fallthru
        _
      %p2250 = scmp.le.s32.totalorder 2, %s31
      // Predicated region
      $region97: #{tpu_custom_call.1} parent=5 // pred_check
        %p2251 = pneg %p2250
      $region98: #{tpu_custom_call.1} parent=5 // pred_check_branch
        %2253 = sbr.rel (%p2251) target = $region100
      $region99: #{tpu_custom_call.1} parent=5 // pred_region
        %s2254 = ssub.s32 %s31, 2
        // Predicated region
        $region101: #{tpu_custom_call.1} parent=99 // pred_check
          %p2255 = pneg %p280
        $region102: #{tpu_custom_call.1} parent=99 // pred_check_branch
          %2257 = sbr.rel (%p2255) target = $region104
        $region103: #{tpu_custom_call.1} parent=99 // pred_region
          %s2258 = sand.u32 %s265, 1
          %s2259 = scalar_lea.sflag [#allocation6], %s2258
          %s2260 = sand.u32 %s265, 1
          %s2261 = smul.addr %s2260, 8
          %s2262 = scalar_lea.vmem [#allocation16], %s2261
          %2263 = dma.done %s2259, 128
        $region104: #{tpu_custom_call.1} parent=99 // pred_fallthru
          _
        // Predicated region
        $region105: #{tpu_custom_call.1} parent=99 // pred_check
          %p2264 = pneg %p308
        $region106: #{tpu_custom_call.1} parent=99 // pred_check_branch
          %2266 = sbr.rel (%p2264) target = $region108
        $region107: #{tpu_custom_call.1} parent=99 // pred_region
          %s2267 = sand.u32 %s293, 1
          %s2268 = scalar_lea.sflag [#allocation18], %s2267
          %s2269 = sand.u32 %s293, 1
          %s2270 = smul.addr %s2269, 32
          %s2271 = scalar_lea.vmem [#allocation17], %s2270
          %2272 = dma.done %s2268, 512
        $region108: #{tpu_custom_call.1} parent=99 // pred_fallthru
          _
      $region100: #{tpu_custom_call.1} parent=5 // pred_fallthru
        _
    $region6: #{tpu_custom_call.1} parent=1 // loop_footer
      %s35 = sadd.s32 1, %s31
    $region7: #{tpu_custom_call.1} parent=1 // loop_footer_branch
      %30 = sbr.rel target = $region3
    $region8: #{tpu_custom_call.1} parent=1 // loop_exit
      _
    %2273 = vsyncpa [#allocation5], 1
    %s2274 = scalar_lea.sflag [#allocation5], 1
    %2275 = vsyncpa %s2274, 1
    %2276 = vsyncpa [#allocation8], 1
    %s2277 = scalar_lea.sflag [#allocation8], 1
    %2278 = vsyncpa %s2277, 1
    %2279 = vsyncpa [#allocation11], 1
    %2280 = vsyncpa [#allocation14], 1
    %2281 = vsyncpa [#allocation6], 1
    %s2282 = scalar_lea.sflag [#allocation6], 1
    %2283 = vsyncpa %s2282, 1
    %2284 = vsyncpa [#allocation18], 1
    %s2285 = scalar_lea.sflag [#allocation18], 1
    %2286 = vsyncpa %s2285, 1

</llo_original>
